<compile_context>
chip_gen: v6e
topology: v6e:2x2x1
jax: 0.10.0
libtpu: 0.0.40
codegen_flags: <defaults>
</compile_context>

<pallas_src>
import jax
import jax.numpy as jnp
import numpy as np
from jax.experimental import pallas as pl
from jax.experimental.pallas import tpu as pltpu


def _round_up(x, m):
    return ((x + m - 1) // m) * m


def attention_gru_kernel(
    ts_ref, len_ref, x_ref,
    wi_ref, wh_ref, bi_ref, bhn_ref,
    fw_ref, fb_ref,
    out_ref, hid_ref,
    gi_scr,
):
    B, T = ts_ref.shape                            # padded batch, time steps
    H = wh_ref.shape[0]                            # padded hidden (lane multiple)

    lengths = len_ref[...]                         # (B, 1) int32

    # ---- masked softmax over time (module: softmax over -ts, ts==-1 -> -1e10) ----
    ts = ts_ref[...]                               # (B, T) f32
    scores = jnp.where(ts == -1.0, jnp.float32(-1e10), -ts)
    m = jnp.max(scores, axis=-1, keepdims=True)
    e = jnp.exp(scores - m)
    attn = e / jnp.sum(e, axis=-1, keepdims=True)  # (B, T)
    # Zero attention beyond each sequence's length ONCE here, so the per-step
    # context accumulation needs no select (packed-seq outputs are zero there).
    t_idx = jax.lax.broadcasted_iota(jnp.int32, (B, T), 1)
    attn = jnp.where(t_idx < lengths, attn, 0.0)

    # ---- one big MXU matmul for every time step's input projection ----
    # x_ref is already the flattened time-major (T*B, H) bf16 slab.
    # Fused bias bi = [b_ir+b_hr, b_iz+b_hz, b_in]; b_hn is applied separately
    # inside the r*(...) term below (PyTorch GRU semantics).
    gi_scr[...] = (jnp.dot(x_ref[...], wi_ref[...],
                           preferred_element_type=jnp.float32)
                   + bi_ref[...])                  # (T*B, 3H) f32 in VMEM scratch

    # hoisted loop invariants
    wh = wh_ref[...]                               # (H, 3H) bf16
    bhn = bhn_ref[...]                             # (1, H)  f32

    h = jnp.zeros((B, H), jnp.float32)
    ctx = jnp.zeros((B, H), jnp.float32)

    # Statically unrolled recurrence (small fixed T): one fused (B,H)@(H,3H)
    # bf16 matmul per step, f32 accumulation and gate math.
    for t in range(T):
        gi = gi_scr[t * B:(t + 1) * B, :]          # (B, 3H) static lane-dense slice
        gh = jnp.dot(h.astype(wh.dtype), wh,
                     preferred_element_type=jnp.float32)   # (B, 3H)
        r = jax.nn.sigmoid(gi[:, 0:H] + gh[:, 0:H])
        z = jax.nn.sigmoid(gi[:, H:2 * H] + gh[:, H:2 * H])
        n = jnp.tanh(gi[:, 2 * H:3 * H] + r * (gh[:, 2 * H:3 * H] + bhn))
        h_new = (1.0 - z) * n + z * h

        ctx = ctx + attn[:, t:t + 1] * h_new       # attn==0 past length -> exact
        h = jnp.where(t < lengths, h_new, h)       # frozen hidden past length

    # fc(cat([hidden, context])) as ONE fused matmul: [h | ctx] @ [Wh_fc ; Wc_fc] + b
    hc = jnp.concatenate([h, ctx], axis=1).astype(fw_ref.dtype)   # (B, 2H) bf16
    out_ref[...] = (jnp.dot(hc, fw_ref[...], preferred_element_type=jnp.float32)
                    + fb_ref[...])
    hid_ref[...] = h


def attention_gru_forward(ts, input_lengths, encoder_outputs, params):
    B, T, H = encoder_outputs.shape
    OUT = params["fc_b"].shape[0]

    B_pad = max(8, _round_up(B, 8))                # sublane multiple
    H_pad = _round_up(H, 128)                      # lane multiple
    OUT_pad = _round_up(OUT, 128)
    f32 = jnp.float32
    bf16 = jnp.bfloat16

    # ---- x: single fused pad + transpose + bf16 cast, flattened to 2D time-major.
    # (Previously: separate f32 pad pass + f32 transpose pass over the whole array.)
    x_tm = (jnp.zeros((T, B_pad, H_pad), bf16)
            .at[:, :B, :H].set(jnp.transpose(encoder_outputs, (1, 0, 2)).astype(bf16))
            ).reshape(T * B_pad, H_pad)            # layout-preserving flatten (wrapper-side)

    ts_p = jnp.full((B_pad, T), -1.0, f32).at[:B, :].set(ts.astype(f32))
    len_p = jnp.zeros((B_pad, 1), jnp.int32).at[:B, 0].set(
        input_lengths.astype(jnp.int32))           # padded rows: length 0 (never update h)

    # ---- GRU weights: PyTorch (3H, H), gate order [r, z, n]; fuse & pad; bf16 operands.
    w_ih, w_hh = params["w_ih"].astype(f32), params["w_hh"].astype(f32)
    b_ih, b_hh = params["b_ih"].astype(f32), params["b_hh"].astype(f32)

    def pad_gate_w(w, dt):                         # (H, H) -> (H_pad, H_pad)
        return jnp.zeros((H_pad, H_pad), dt).at[:H, :H].set(w.astype(dt))

    def pad_gate_b(b):                             # (H,) -> (H_pad,)
        return jnp.zeros((H_pad,), f32).at[:H].set(b)

    wi = jnp.concatenate(
        [pad_gate_w(w_ih[g * H:(g + 1) * H].T, bf16) for g in range(3)], axis=1)
    wh = jnp.concatenate(
        [pad_gate_w(w_hh[g * H:(g + 1) * H].T, bf16) for g in range(3)], axis=1)

    # Fold b_hh's r/z parts into the input bias; keep b_hn separate because the
    # GRU applies it inside r * (W_hn h + b_hn).
    bi = jnp.concatenate([
        pad_gate_b(b_ih[0:H] + b_hh[0:H]),
        pad_gate_b(b_ih[H:2 * H] + b_hh[H:2 * H]),
        pad_gate_b(b_ih[2 * H:3 * H]),
    ]).reshape(1, 3 * H_pad)
    bhn = pad_gate_b(b_hh[2 * H:3 * H]).reshape(1, H_pad)

    # ---- fc: cat([hidden, context]) @ fc_w.T + fc_b == [h|ctx] @ [fwh ; fwc] + fb ----
    fc_w, fc_b = params["fc_w"].astype(f32), params["fc_b"].astype(f32)
    fw = (jnp.zeros((2 * H_pad, OUT_pad), bf16)
          .at[:H, :OUT].set(fc_w[:, :H].T.astype(bf16))
          .at[H_pad:H_pad + H, :OUT].set(fc_w[:, H:].T.astype(bf16)))
    fb = jnp.zeros((1, OUT_pad), f32).at[0, :OUT].set(fc_b)

    args = (ts_p, len_p, x_tm, wi, wh, bi, bhn, fw, fb)
    vmem = pl.BlockSpec(memory_space=pltpu.MemorySpace.VMEM)

    out_p, hid_p = pl.pallas_call(
        attention_gru_kernel,
        out_shape=(jax.ShapeDtypeStruct((B_pad, OUT_pad), f32),
                   jax.ShapeDtypeStruct((B_pad, H_pad), f32)),
        in_specs=[vmem] * len(args),
        out_specs=(vmem, vmem),
        scratch_shapes=[pltpu.VMEM((T * B_pad, 3 * H_pad), f32)],  # gi for all steps
        # Total footprint here is < 1 MiB; 32 MiB scoped limit is safe on
        # v5e/v6e (128 MiB VMEM) and v7x (64 MiB VMEM) alike.
        compiler_params=pltpu.CompilerParams(vmem_limit_bytes=32 * 1024 * 1024),
    )(*args)

    return out_p[:B, :OUT], hid_p[:B, :H]


def reference_forward(ts, input_lengths, encoder_outputs, params):
    """Pure-JAX f32 reference mirroring the PyTorch module."""
    B, T, H = encoder_outputs.shape
    w_ih, w_hh, b_ih, b_hh = (params["w_ih"], params["w_hh"],
                              params["b_ih"], params["b_hh"])
    h = jnp.zeros((B, H), jnp.float32)
    outs = []
    for t in range(T):
        x_t = encoder_outputs[:, t, :]
        gi = x_t @ w_ih.T + b_ih
        gh = h @ w_hh.T + b_hh
        ir, iz, inn = gi[:, :H], gi[:, H:2 * H], gi[:, 2 * H:]
        hr, hz, hn = gh[:, :H], gh[:, H:2 * H], gh[:, 2 * H:]
        r = jax.nn.sigmoid(ir + hr)
        z = jax.nn.sigmoid(iz + hz)
        n = jnp.tanh(inn + r * hn)
        h_new = (1.0 - z) * n + z * h
        valid = (t < input_lengths)[:, None]
        outs.append(jnp.where(valid, h_new, 0.0))
        h = jnp.where(valid, h_new, h)
    gru_out = jnp.stack(outs, axis=1)                        # (B, T, H)
    scores = jnp.where(ts == -1.0, jnp.float32(-1e10), -ts)
    attn = jax.nn.softmax(scores, axis=-1)
    ctx = jnp.einsum("bt,bth->bh", attn, gru_out)
    cat = jnp.concatenate([h, ctx], axis=1)
    out = cat @ params["fc_w"].T + params["fc_b"]
    return out, h


if __name__ == "__main__":
    B, T, H, OUT = 4, 8, 32, 16

    key = jax.random.PRNGKey(0)
    keys = jax.random.split(key, 8)
    k = 1.0 / np.sqrt(H)
    kf = 1.0 / np.sqrt(2 * H)
    params = {
        "w_ih": jax.random.uniform(keys[0], (3 * H, H), jnp.float32, -k, k),
        "w_hh": jax.random.uniform(keys[1], (3 * H, H), jnp.float32, -k, k),
        "b_ih": jax.random.uniform(keys[2], (3 * H,), jnp.float32, -k, k),
        "b_hh": jax.random.uniform(keys[3], (3 * H,), jnp.float32, -k, k),
        "fc_w": jax.random.uniform(keys[4], (OUT, 2 * H), jnp.float32, -kf, kf),
        "fc_b": jax.random.uniform(keys[5], (OUT,), jnp.float32, -kf, kf),
    }

    encoder_outputs = jax.random.normal(keys[6], (B, T, H), jnp.float32)
    input_lengths = jnp.array([8, 5, 7, 3], dtype=jnp.int32)   # max == T

    # ts: valid (non-negative) timestamps where t < length, -1 padding elsewhere
    ts_vals = jax.random.uniform(keys[7], (B, T), jnp.float32, 0.0, 5.0)
    t_idx = jnp.arange(T)[None, :]
    ts = jnp.where(t_idx < input_lengths[:, None], ts_vals, jnp.float32(-1.0))

    out, hidden = attention_gru_forward(ts, input_lengths, encoder_outputs, params)
    jax.block_until_ready((out, hidden))

    ref_out, ref_hidden = reference_forward(ts, input_lengths, encoder_outputs, params)
    # Tolerance relaxed vs. the all-f32 version: matmul OPERANDS are bf16 on
    # the MXU (accumulation stays f32), so per-step gate errors are O(1e-3).
    np.testing.assert_allclose(np.asarray(out), np.asarray(ref_out),
                               rtol=2e-2, atol=2e-2)
    np.testing.assert_allclose(np.asarray(hidden), np.asarray(ref_hidden),
                               rtol=2e-2, atol=2e-2)
    print("KERNEL_OK")
</pallas_src>

<mosaic_0001>
module attributes {stable_mosaic.version = 11 : i64} {
  func.func @attention_gru_kernel(%arg0: memref<8x8xf32, #tpu.memory_space<vmem>>, %arg1: memref<8x1xi32, #tpu.memory_space<vmem>>, %arg2: memref<64x128xbf16, #tpu.memory_space<vmem>>, %arg3: memref<128x384xbf16, #tpu.memory_space<vmem>>, %arg4: memref<128x384xbf16, #tpu.memory_space<vmem>>, %arg5: memref<1x384xf32, #tpu.memory_space<vmem>>, %arg6: memref<1x128xf32, #tpu.memory_space<vmem>>, %arg7: memref<256x128xbf16, #tpu.memory_space<vmem>>, %arg8: memref<1x128xf32, #tpu.memory_space<vmem>>, %arg9: memref<8x128xf32, #tpu.memory_space<vmem>>, %arg10: memref<8x128xf32, #tpu.memory_space<vmem>>, %arg11: memref<64x384xf32, #tpu.memory_space<vmem>>) attributes {dimension_semantics = [], scalar_prefetch = 0 : i64, scratch_operands = 1 : i64, tpu.core_type = #tpu.core_type<tc>} {
    %c0 = arith.constant 0 : index
    %c0_0 = arith.constant 0 : index
    %0 = vector.load %arg1[%c0, %c0_0] : memref<8x1xi32, #tpu.memory_space<vmem>>, vector<8x1xi32>
    %c0_1 = arith.constant 0 : index
    %c0_2 = arith.constant 0 : index
    %1 = vector.load %arg0[%c0_1, %c0_2] : memref<8x8xf32, #tpu.memory_space<vmem>>, vector<8x8xf32>
    %cst = arith.constant -1.000000e+00 : f32
    %2 = vector.broadcast %cst : f32 to vector<8x8xf32>
    %3 = arith.cmpf oeq, %1, %2 : vector<8x8xf32>
    %cst_3 = arith.constant 0.000000e+00 : f32
    %4 = vector.broadcast %cst_3 : f32 to vector<8x8xf32>
    %5 = arith.subf %4, %1 : vector<8x8xf32>
    %cst_4 = arith.constant -1.000000e+10 : f32
    %6 = vector.broadcast %cst_4 : f32 to vector<8x8xf32>
    %7 = arith.select %3, %6, %5 : vector<8x8xi1>, vector<8x8xf32>
    %cst_5 = arith.constant dense<0xFF800000> : vector<8xf32>
    %8 = vector.multi_reduction <maximumf>, %7, %cst_5 [1] : vector<8x8xf32> to vector<8xf32>
    %9 = vector.shape_cast %8 : vector<8xf32> to vector<8x1xf32>
    %10 = vector.broadcast %9 : vector<8x1xf32> to vector<8x8xf32>
    %11 = arith.subf %7, %10 : vector<8x8xf32>
    %12 = math.exp %11 : vector<8x8xf32>
    %cst_6 = arith.constant dense<0.000000e+00> : vector<8xf32>
    %13 = vector.multi_reduction <add>, %12, %cst_6 [1] : vector<8x8xf32> to vector<8xf32>
    %14 = vector.shape_cast %13 : vector<8xf32> to vector<8x1xf32>
    %15 = vector.broadcast %14 : vector<8x1xf32> to vector<8x8xf32>
    %16 = arith.divf %12, %15 : vector<8x8xf32>
    %17 = tpu.iota {dimensions = array<i32: 1>} : vector<8x8xi32>
    %18 = vector.broadcast %0 : vector<8x1xi32> to vector<8x8xi32>
    %19 = arith.cmpi slt, %17, %18 : vector<8x8xi32>
    %cst_7 = arith.constant 0.000000e+00 : f32
    %20 = vector.broadcast %cst_7 : f32 to vector<8x8xf32>
    %21 = arith.select %19, %16, %20 : vector<8x8xi1>, vector<8x8xf32>
    %c0_8 = arith.constant 0 : index
    %c0_9 = arith.constant 0 : index
    %22 = vector.load %arg2[%c0_8, %c0_9] : memref<64x128xbf16, #tpu.memory_space<vmem>>, vector<64x128xbf16>
    %c0_10 = arith.constant 0 : index
    %c0_11 = arith.constant 0 : index
    %23 = vector.load %arg3[%c0_10, %c0_11] : memref<128x384xbf16, #tpu.memory_space<vmem>>, vector<128x384xbf16>
    %cst_12 = arith.constant dense<0.000000e+00> : vector<64x384xf32>
    %24 = tpu.matmul %22, %23, %cst_12 {dimension_numbers = #tpu.dot_dimension_numbers<[1], [0], [0], [1], [0, 0, 1, 1], [], []>} : vector<64x128xbf16>, vector<128x384xbf16>, vector<64x384xf32> -> vector<64x384xf32>
    %c0_13 = arith.constant 0 : index
    %c0_14 = arith.constant 0 : index
    %25 = vector.load %arg5[%c0_13, %c0_14] : memref<1x384xf32, #tpu.memory_space<vmem>>, vector<1x384xf32>
    %26 = vector.broadcast %25 : vector<1x384xf32> to vector<64x384xf32>
    %27 = arith.addf %24, %26 : vector<64x384xf32>
    %c0_15 = arith.constant 0 : index
    %c0_16 = arith.constant 0 : index
    %28 = vector.load %arg11[%c0_15, %c0_16] : memref<64x384xf32, #tpu.memory_space<vmem>>, vector<64x384xf32>
    tpu.vector_store %arg11[%c0_15, %c0_16], %27 {strides = array<i32>} : memref<64x384xf32, #tpu.memory_space<vmem>>, vector<64x384xf32>,
    %c0_17 = arith.constant 0 : index
    %c0_18 = arith.constant 0 : index
    %29 = vector.load %arg4[%c0_17, %c0_18] : memref<128x384xbf16, #tpu.memory_space<vmem>>, vector<128x384xbf16>
    %c0_19 = arith.constant 0 : index
    %c0_20 = arith.constant 0 : index
    %30 = vector.load %arg6[%c0_19, %c0_20] : memref<1x128xf32, #tpu.memory_space<vmem>>, vector<1x128xf32>
    %cst_21 = arith.constant 0.000000e+00 : f32
    %31 = vector.broadcast %cst_21 : f32 to vector<8x128xf32>
    %cst_22 = arith.constant 0.000000e+00 : f32
    %32 = vector.broadcast %cst_22 : f32 to vector<8x128xf32>
    %c0_23 = arith.constant 0 : index
    %c0_24 = arith.constant 0 : index
    %33 = vector.load %arg11[%c0_23, %c0_24] : memref<64x384xf32, #tpu.memory_space<vmem>>, vector<8x384xf32>
    %34 = arith.truncf %31 : vector<8x128xf32> to vector<8x128xbf16>
    %cst_25 = arith.constant dense<0.000000e+00> : vector<8x384xf32>
    %35 = tpu.matmul %34, %29, %cst_25 {dimension_numbers = #tpu.dot_dimension_numbers<[1], [0], [0], [1], [0, 0, 1, 1], [], []>} : vector<8x128xbf16>, vector<128x384xbf16>, vector<8x384xf32> -> vector<8x384xf32>
    %36 = vector.extract_strided_slice %33 {offsets = [0, 0], sizes = [8, 128], strides = [1, 1]} : vector<8x384xf32> to vector<8x128xf32>
    %37 = vector.extract_strided_slice %35 {offsets = [0, 0], sizes = [8, 128], strides = [1, 1]} : vector<8x384xf32> to vector<8x128xf32>
    %38 = arith.addf %36, %37 : vector<8x128xf32>
    %39 = arith.negf %38 : vector<8x128xf32>
    %40 = math.exp %39 : vector<8x128xf32>
    %cst_26 = arith.constant 1.000000e+00 : f32
    %41 = vector.broadcast %cst_26 : f32 to vector<8x128xf32>
    %42 = arith.addf %41, %40 : vector<8x128xf32>
    %43 = arith.divf %41, %42 : vector<8x128xf32>
    %44 = vector.extract_strided_slice %33 {offsets = [0, 128], sizes = [8, 128], strides = [1, 1]} : vector<8x384xf32> to vector<8x128xf32>
    %45 = vector.extract_strided_slice %35 {offsets = [0, 128], sizes = [8, 128], strides = [1, 1]} : vector<8x384xf32> to vector<8x128xf32>
    %46 = arith.addf %44, %45 : vector<8x128xf32>
    %47 = arith.negf %46 : vector<8x128xf32>
    %48 = math.exp %47 : vector<8x128xf32>
    %cst_27 = arith.constant 1.000000e+00 : f32
    %49 = vector.broadcast %cst_27 : f32 to vector<8x128xf32>
    %50 = arith.addf %49, %48 : vector<8x128xf32>
    %51 = arith.divf %49, %50 : vector<8x128xf32>
    %52 = vector.extract_strided_slice %33 {offsets = [0, 256], sizes = [8, 128], strides = [1, 1]} : vector<8x384xf32> to vector<8x128xf32>
    %53 = vector.extract_strided_slice %35 {offsets = [0, 256], sizes = [8, 128], strides = [1, 1]} : vector<8x384xf32> to vector<8x128xf32>
    %54 = vector.broadcast %30 : vector<1x128xf32> to vector<8x128xf32>
    %55 = arith.addf %53, %54 : vector<8x128xf32>
    %56 = arith.mulf %43, %55 : vector<8x128xf32>
    %57 = arith.addf %52, %56 : vector<8x128xf32>
    %58 = math.tanh %57 : vector<8x128xf32>
    %cst_28 = arith.constant 1.000000e+00 : f32
    %59 = vector.broadcast %cst_28 : f32 to vector<8x128xf32>
    %60 = arith.subf %59, %51 : vector<8x128xf32>
    %61 = arith.mulf %60, %58 : vector<8x128xf32>
    %62 = arith.mulf %51, %31 : vector<8x128xf32>
    %63 = arith.addf %61, %62 : vector<8x128xf32>
    %64 = vector.extract_strided_slice %21 {offsets = [0, 0], sizes = [8, 1], strides = [1, 1]} : vector<8x8xf32> to vector<8x1xf32>
    %65 = vector.broadcast %64 : vector<8x1xf32> to vector<8x128xf32>
    %66 = arith.mulf %65, %63 : vector<8x128xf32>
    %67 = arith.addf %32, %66 : vector<8x128xf32>
    %c0_i32 = arith.constant 0 : i32
    %68 = vector.broadcast %c0_i32 : i32 to vector<8x1xi32>
    %69 = arith.cmpi sgt, %0, %68 : vector<8x1xi32>
    %70 = vector.shape_cast %69 : vector<8x1xi1> to vector<8x1xi1>
    %71 = vector.broadcast %70 : vector<8x1xi1> to vector<8x128xi1>
    %72 = arith.select %71, %63, %31 : vector<8x128xi1>, vector<8x128xf32>
    %c8 = arith.constant 8 : index
    %c0_29 = arith.constant 0 : index
    %73 = vector.load %arg11[%c8, %c0_29] : memref<64x384xf32, #tpu.memory_space<vmem>>, vector<8x384xf32>
    %74 = arith.truncf %72 : vector<8x128xf32> to vector<8x128xbf16>
    %cst_30 = arith.constant dense<0.000000e+00> : vector<8x384xf32>
    %75 = tpu.matmul %74, %29, %cst_30 {dimension_numbers = #tpu.dot_dimension_numbers<[1], [0], [0], [1], [0, 0, 1, 1], [], []>} : vector<8x128xbf16>, vector<128x384xbf16>, vector<8x384xf32> -> vector<8x384xf32>
    %76 = vector.extract_strided_slice %73 {offsets = [0, 0], sizes = [8, 128], strides = [1, 1]} : vector<8x384xf32> to vector<8x128xf32>
    %77 = vector.extract_strided_slice %75 {offsets = [0, 0], sizes = [8, 128], strides = [1, 1]} : vector<8x384xf32> to vector<8x128xf32>
    %78 = arith.addf %76, %77 : vector<8x128xf32>
    %79 = arith.negf %78 : vector<8x128xf32>
    %80 = math.exp %79 : vector<8x128xf32>
    %cst_31 = arith.constant 1.000000e+00 : f32
    %81 = vector.broadcast %cst_31 : f32 to vector<8x128xf32>
    %82 = arith.addf %81, %80 : vector<8x128xf32>
    %83 = arith.divf %81, %82 : vector<8x128xf32>
    %84 = vector.extract_strided_slice %73 {offsets = [0, 128], sizes = [8, 128], strides = [1, 1]} : vector<8x384xf32> to vector<8x128xf32>
    %85 = vector.extract_strided_slice %75 {offsets = [0, 128], sizes = [8, 128], strides = [1, 1]} : vector<8x384xf32> to vector<8x128xf32>
    %86 = arith.addf %84, %85 : vector<8x128xf32>
    %87 = arith.negf %86 : vector<8x128xf32>
    %88 = math.exp %87 : vector<8x128xf32>
    %cst_32 = arith.constant 1.000000e+00 : f32
    %89 = vector.broadcast %cst_32 : f32 to vector<8x128xf32>
    %90 = arith.addf %89, %88 : vector<8x128xf32>
    %91 = arith.divf %89, %90 : vector<8x128xf32>
    %92 = vector.extract_strided_slice %73 {offsets = [0, 256], sizes = [8, 128], strides = [1, 1]} : vector<8x384xf32> to vector<8x128xf32>
    %93 = vector.extract_strided_slice %75 {offsets = [0, 256], sizes = [8, 128], strides = [1, 1]} : vector<8x384xf32> to vector<8x128xf32>
    %94 = vector.broadcast %30 : vector<1x128xf32> to vector<8x128xf32>
    %95 = arith.addf %93, %94 : vector<8x128xf32>
    %96 = arith.mulf %83, %95 : vector<8x128xf32>
    %97 = arith.addf %92, %96 : vector<8x128xf32>
    %98 = math.tanh %97 : vector<8x128xf32>
    %cst_33 = arith.constant 1.000000e+00 : f32
    %99 = vector.broadcast %cst_33 : f32 to vector<8x128xf32>
    %100 = arith.subf %99, %91 : vector<8x128xf32>
    %101 = arith.mulf %100, %98 : vector<8x128xf32>
    %102 = arith.mulf %91, %72 : vector<8x128xf32>
    %103 = arith.addf %101, %102 : vector<8x128xf32>
    %104 = vector.extract_strided_slice %21 {offsets = [0, 1], sizes = [8, 1], strides = [1, 1]} : vector<8x8xf32> to vector<8x1xf32>
    %105 = vector.broadcast %104 : vector<8x1xf32> to vector<8x128xf32>
    %106 = arith.mulf %105, %103 : vector<8x128xf32>
    %107 = arith.addf %67, %106 : vector<8x128xf32>
    %c1_i32 = arith.constant 1 : i32
    %108 = vector.broadcast %c1_i32 : i32 to vector<8x1xi32>
    %109 = arith.cmpi sgt, %0, %108 : vector<8x1xi32>
    %110 = vector.shape_cast %109 : vector<8x1xi1> to vector<8x1xi1>
    %111 = vector.broadcast %110 : vector<8x1xi1> to vector<8x128xi1>
    %112 = arith.select %111, %103, %72 : vector<8x128xi1>, vector<8x128xf32>
    %c16 = arith.constant 16 : index
    %c0_34 = arith.constant 0 : index
    %113 = vector.load %arg11[%c16, %c0_34] : memref<64x384xf32, #tpu.memory_space<vmem>>, vector<8x384xf32>
    %114 = arith.truncf %112 : vector<8x128xf32> to vector<8x128xbf16>
    %cst_35 = arith.constant dense<0.000000e+00> : vector<8x384xf32>
    %115 = tpu.matmul %114, %29, %cst_35 {dimension_numbers = #tpu.dot_dimension_numbers<[1], [0], [0], [1], [0, 0, 1, 1], [], []>} : vector<8x128xbf16>, vector<128x384xbf16>, vector<8x384xf32> -> vector<8x384xf32>
    %116 = vector.extract_strided_slice %113 {offsets = [0, 0], sizes = [8, 128], strides = [1, 1]} : vector<8x384xf32> to vector<8x128xf32>
    %117 = vector.extract_strided_slice %115 {offsets = [0, 0], sizes = [8, 128], strides = [1, 1]} : vector<8x384xf32> to vector<8x128xf32>
    %118 = arith.addf %116, %117 : vector<8x128xf32>
    %119 = arith.negf %118 : vector<8x128xf32>
    %120 = math.exp %119 : vector<8x128xf32>
    %cst_36 = arith.constant 1.000000e+00 : f32
    %121 = vector.broadcast %cst_36 : f32 to vector<8x128xf32>
    %122 = arith.addf %121, %120 : vector<8x128xf32>
    %123 = arith.divf %121, %122 : vector<8x128xf32>
    %124 = vector.extract_strided_slice %113 {offsets = [0, 128], sizes = [8, 128], strides = [1, 1]} : vector<8x384xf32> to vector<8x128xf32>
    %125 = vector.extract_strided_slice %115 {offsets = [0, 128], sizes = [8, 128], strides = [1, 1]} : vector<8x384xf32> to vector<8x128xf32>
    %126 = arith.addf %124, %125 : vector<8x128xf32>
    %127 = arith.negf %126 : vector<8x128xf32>
    %128 = math.exp %127 : vector<8x128xf32>
    %cst_37 = arith.constant 1.000000e+00 : f32
    %129 = vector.broadcast %cst_37 : f32 to vector<8x128xf32>
    %130 = arith.addf %129, %128 : vector<8x128xf32>
    %131 = arith.divf %129, %130 : vector<8x128xf32>
    %132 = vector.extract_strided_slice %113 {offsets = [0, 256], sizes = [8, 128], strides = [1, 1]} : vector<8x384xf32> to vector<8x128xf32>
    %133 = vector.extract_strided_slice %115 {offsets = [0, 256], sizes = [8, 128], strides = [1, 1]} : vector<8x384xf32> to vector<8x128xf32>
    %134 = vector.broadcast %30 : vector<1x128xf32> to vector<8x128xf32>
    %135 = arith.addf %133, %134 : vector<8x128xf32>
    %136 = arith.mulf %123, %135 : vector<8x128xf32>
    %137 = arith.addf %132, %136 : vector<8x128xf32>
    %138 = math.tanh %137 : vector<8x128xf32>
    %cst_38 = arith.constant 1.000000e+00 : f32
    %139 = vector.broadcast %cst_38 : f32 to vector<8x128xf32>
    %140 = arith.subf %139, %131 : vector<8x128xf32>
    %141 = arith.mulf %140, %138 : vector<8x128xf32>
    %142 = arith.mulf %131, %112 : vector<8x128xf32>
    %143 = arith.addf %141, %142 : vector<8x128xf32>
    %144 = vector.extract_strided_slice %21 {offsets = [0, 2], sizes = [8, 1], strides = [1, 1]} : vector<8x8xf32> to vector<8x1xf32>
    %145 = vector.broadcast %144 : vector<8x1xf32> to vector<8x128xf32>
    %146 = arith.mulf %145, %143 : vector<8x128xf32>
    %147 = arith.addf %107, %146 : vector<8x128xf32>
    %c2_i32 = arith.constant 2 : i32
    %148 = vector.broadcast %c2_i32 : i32 to vector<8x1xi32>
    %149 = arith.cmpi sgt, %0, %148 : vector<8x1xi32>
    %150 = vector.shape_cast %149 : vector<8x1xi1> to vector<8x1xi1>
    %151 = vector.broadcast %150 : vector<8x1xi1> to vector<8x128xi1>
    %152 = arith.select %151, %143, %112 : vector<8x128xi1>, vector<8x128xf32>
    %c24 = arith.constant 24 : index
    %c0_39 = arith.constant 0 : index
    %153 = vector.load %arg11[%c24, %c0_39] : memref<64x384xf32, #tpu.memory_space<vmem>>, vector<8x384xf32>
    %154 = arith.truncf %152 : vector<8x128xf32> to vector<8x128xbf16>
    %cst_40 = arith.constant dense<0.000000e+00> : vector<8x384xf32>
    %155 = tpu.matmul %154, %29, %cst_40 {dimension_numbers = #tpu.dot_dimension_numbers<[1], [0], [0], [1], [0, 0, 1, 1], [], []>} : vector<8x128xbf16>, vector<128x384xbf16>, vector<8x384xf32> -> vector<8x384xf32>
    %156 = vector.extract_strided_slice %153 {offsets = [0, 0], sizes = [8, 128], strides = [1, 1]} : vector<8x384xf32> to vector<8x128xf32>
    %157 = vector.extract_strided_slice %155 {offsets = [0, 0], sizes = [8, 128], strides = [1, 1]} : vector<8x384xf32> to vector<8x128xf32>
    %158 = arith.addf %156, %157 : vector<8x128xf32>
    %159 = arith.negf %158 : vector<8x128xf32>
    %160 = math.exp %159 : vector<8x128xf32>
    %cst_41 = arith.constant 1.000000e+00 : f32
    %161 = vector.broadcast %cst_41 : f32 to vector<8x128xf32>
    %162 = arith.addf %161, %160 : vector<8x128xf32>
    %163 = arith.divf %161, %162 : vector<8x128xf32>
    %164 = vector.extract_strided_slice %153 {offsets = [0, 128], sizes = [8, 128], strides = [1, 1]} : vector<8x384xf32> to vector<8x128xf32>
    %165 = vector.extract_strided_slice %155 {offsets = [0, 128], sizes = [8, 128], strides = [1, 1]} : vector<8x384xf32> to vector<8x128xf32>
    %166 = arith.addf %164, %165 : vector<8x128xf32>
    %167 = arith.negf %166 : vector<8x128xf32>
    %168 = math.exp %167 : vector<8x128xf32>
    %cst_42 = arith.constant 1.000000e+00 : f32
    %169 = vector.broadcast %cst_42 : f32 to vector<8x128xf32>
    %170 = arith.addf %169, %168 : vector<8x128xf32>
    %171 = arith.divf %169, %170 : vector<8x128xf32>
    %172 = vector.extract_strided_slice %153 {offsets = [0, 256], sizes = [8, 128], strides = [1, 1]} : vector<8x384xf32> to vector<8x128xf32>
    %173 = vector.extract_strided_slice %155 {offsets = [0, 256], sizes = [8, 128], strides = [1, 1]} : vector<8x384xf32> to vector<8x128xf32>
    %174 = vector.broadcast %30 : vector<1x128xf32> to vector<8x128xf32>
    %175 = arith.addf %173, %174 : vector<8x128xf32>
    %176 = arith.mulf %163, %175 : vector<8x128xf32>
    %177 = arith.addf %172, %176 : vector<8x128xf32>
    %178 = math.tanh %177 : vector<8x128xf32>
    %cst_43 = arith.constant 1.000000e+00 : f32
    %179 = vector.broadcast %cst_43 : f32 to vector<8x128xf32>
    %180 = arith.subf %179, %171 : vector<8x128xf32>
    %181 = arith.mulf %180, %178 : vector<8x128xf32>
    %182 = arith.mulf %171, %152 : vector<8x128xf32>
    %183 = arith.addf %181, %182 : vector<8x128xf32>
    %184 = vector.extract_strided_slice %21 {offsets = [0, 3], sizes = [8, 1], strides = [1, 1]} : vector<8x8xf32> to vector<8x1xf32>
    %185 = vector.broadcast %184 : vector<8x1xf32> to vector<8x128xf32>
    %186 = arith.mulf %185, %183 : vector<8x128xf32>
    %187 = arith.addf %147, %186 : vector<8x128xf32>
    %c3_i32 = arith.constant 3 : i32
    %188 = vector.broadcast %c3_i32 : i32 to vector<8x1xi32>
    %189 = arith.cmpi sgt, %0, %188 : vector<8x1xi32>
    %190 = vector.shape_cast %189 : vector<8x1xi1> to vector<8x1xi1>
    %191 = vector.broadcast %190 : vector<8x1xi1> to vector<8x128xi1>
    %192 = arith.select %191, %183, %152 : vector<8x128xi1>, vector<8x128xf32>
    %c32 = arith.constant 32 : index
    %c0_44 = arith.constant 0 : index
    %193 = vector.load %arg11[%c32, %c0_44] : memref<64x384xf32, #tpu.memory_space<vmem>>, vector<8x384xf32>
    %194 = arith.truncf %192 : vector<8x128xf32> to vector<8x128xbf16>
    %cst_45 = arith.constant dense<0.000000e+00> : vector<8x384xf32>
    %195 = tpu.matmul %194, %29, %cst_45 {dimension_numbers = #tpu.dot_dimension_numbers<[1], [0], [0], [1], [0, 0, 1, 1], [], []>} : vector<8x128xbf16>, vector<128x384xbf16>, vector<8x384xf32> -> vector<8x384xf32>
    %196 = vector.extract_strided_slice %193 {offsets = [0, 0], sizes = [8, 128], strides = [1, 1]} : vector<8x384xf32> to vector<8x128xf32>
    %197 = vector.extract_strided_slice %195 {offsets = [0, 0], sizes = [8, 128], strides = [1, 1]} : vector<8x384xf32> to vector<8x128xf32>
    %198 = arith.addf %196, %197 : vector<8x128xf32>
    %199 = arith.negf %198 : vector<8x128xf32>
    %200 = math.exp %199 : vector<8x128xf32>
    %cst_46 = arith.constant 1.000000e+00 : f32
    %201 = vector.broadcast %cst_46 : f32 to vector<8x128xf32>
    %202 = arith.addf %201, %200 : vector<8x128xf32>
    %203 = arith.divf %201, %202 : vector<8x128xf32>
    %204 = vector.extract_strided_slice %193 {offsets = [0, 128], sizes = [8, 128], strides = [1, 1]} : vector<8x384xf32> to vector<8x128xf32>
    %205 = vector.extract_strided_slice %195 {offsets = [0, 128], sizes = [8, 128], strides = [1, 1]} : vector<8x384xf32> to vector<8x128xf32>
    %206 = arith.addf %204, %205 : vector<8x128xf32>
    %207 = arith.negf %206 : vector<8x128xf32>
    %208 = math.exp %207 : vector<8x128xf32>
    %cst_47 = arith.constant 1.000000e+00 : f32
    %209 = vector.broadcast %cst_47 : f32 to vector<8x128xf32>
    %210 = arith.addf %209, %208 : vector<8x128xf32>
    %211 = arith.divf %209, %210 : vector<8x128xf32>
    %212 = vector.extract_strided_slice %193 {offsets = [0, 256], sizes = [8, 128], strides = [1, 1]} : vector<8x384xf32> to vector<8x128xf32>
    %213 = vector.extract_strided_slice %195 {offsets = [0, 256], sizes = [8, 128], strides = [1, 1]} : vector<8x384xf32> to vector<8x128xf32>
    %214 = vector.broadcast %30 : vector<1x128xf32> to vector<8x128xf32>
    %215 = arith.addf %213, %214 : vector<8x128xf32>
    %216 = arith.mulf %203, %215 : vector<8x128xf32>
    %217 = arith.addf %212, %216 : vector<8x128xf32>
    %218 = math.tanh %217 : vector<8x128xf32>
    %cst_48 = arith.constant 1.000000e+00 : f32
    %219 = vector.broadcast %cst_48 : f32 to vector<8x128xf32>
    %220 = arith.subf %219, %211 : vector<8x128xf32>
    %221 = arith.mulf %220, %218 : vector<8x128xf32>
    %222 = arith.mulf %211, %192 : vector<8x128xf32>
    %223 = arith.addf %221, %222 : vector<8x128xf32>
    %224 = vector.extract_strided_slice %21 {offsets = [0, 4], sizes = [8, 1], strides = [1, 1]} : vector<8x8xf32> to vector<8x1xf32>
    %225 = vector.broadcast %224 : vector<8x1xf32> to vector<8x128xf32>
    %226 = arith.mulf %225, %223 : vector<8x128xf32>
    %227 = arith.addf %187, %226 : vector<8x128xf32>
    %c4_i32 = arith.constant 4 : i32
    %228 = vector.broadcast %c4_i32 : i32 to vector<8x1xi32>
    %229 = arith.cmpi sgt, %0, %228 : vector<8x1xi32>
    %230 = vector.shape_cast %229 : vector<8x1xi1> to vector<8x1xi1>
    %231 = vector.broadcast %230 : vector<8x1xi1> to vector<8x128xi1>
    %232 = arith.select %231, %223, %192 : vector<8x128xi1>, vector<8x128xf32>
    %c40 = arith.constant 40 : index
    %c0_49 = arith.constant 0 : index
    %233 = vector.load %arg11[%c40, %c0_49] : memref<64x384xf32, #tpu.memory_space<vmem>>, vector<8x384xf32>
    %234 = arith.truncf %232 : vector<8x128xf32> to vector<8x128xbf16>
    %cst_50 = arith.constant dense<0.000000e+00> : vector<8x384xf32>
    %235 = tpu.matmul %234, %29, %cst_50 {dimension_numbers = #tpu.dot_dimension_numbers<[1], [0], [0], [1], [0, 0, 1, 1], [], []>} : vector<8x128xbf16>, vector<128x384xbf16>, vector<8x384xf32> -> vector<8x384xf32>
    %236 = vector.extract_strided_slice %233 {offsets = [0, 0], sizes = [8, 128], strides = [1, 1]} : vector<8x384xf32> to vector<8x128xf32>
    %237 = vector.extract_strided_slice %235 {offsets = [0, 0], sizes = [8, 128], strides = [1, 1]} : vector<8x384xf32> to vector<8x128xf32>
    %238 = arith.addf %236, %237 : vector<8x128xf32>
    %239 = arith.negf %238 : vector<8x128xf32>
    %240 = math.exp %239 : vector<8x128xf32>
    %cst_51 = arith.constant 1.000000e+00 : f32
    %241 = vector.broadcast %cst_51 : f32 to vector<8x128xf32>
    %242 = arith.addf %241, %240 : vector<8x128xf32>
    %243 = arith.divf %241, %242 : vector<8x128xf32>
    %244 = vector.extract_strided_slice %233 {offsets = [0, 128], sizes = [8, 128], strides = [1, 1]} : vector<8x384xf32> to vector<8x128xf32>
    %245 = vector.extract_strided_slice %235 {offsets = [0, 128], sizes = [8, 128], strides = [1, 1]} : vector<8x384xf32> to vector<8x128xf32>
    %246 = arith.addf %244, %245 : vector<8x128xf32>
    %247 = arith.negf %246 : vector<8x128xf32>
    %248 = math.exp %247 : vector<8x128xf32>
    %cst_52 = arith.constant 1.000000e+00 : f32
    %249 = vector.broadcast %cst_52 : f32 to vector<8x128xf32>
    %250 = arith.addf %249, %248 : vector<8x128xf32>
    %251 = arith.divf %249, %250 : vector<8x128xf32>
    %252 = vector.extract_strided_slice %233 {offsets = [0, 256], sizes = [8, 128], strides = [1, 1]} : vector<8x384xf32> to vector<8x128xf32>
    %253 = vector.extract_strided_slice %235 {offsets = [0, 256], sizes = [8, 128], strides = [1, 1]} : vector<8x384xf32> to vector<8x128xf32>
    %254 = vector.broadcast %30 : vector<1x128xf32> to vector<8x128xf32>
    %255 = arith.addf %253, %254 : vector<8x128xf32>
    %256 = arith.mulf %243, %255 : vector<8x128xf32>
    %257 = arith.addf %252, %256 : vector<8x128xf32>
    %258 = math.tanh %257 : vector<8x128xf32>
    %cst_53 = arith.constant 1.000000e+00 : f32
    %259 = vector.broadcast %cst_53 : f32 to vector<8x128xf32>
    %260 = arith.subf %259, %251 : vector<8x128xf32>
    %261 = arith.mulf %260, %258 : vector<8x128xf32>
    %262 = arith.mulf %251, %232 : vector<8x128xf32>
    %263 = arith.addf %261, %262 : vector<8x128xf32>
    %264 = vector.extract_strided_slice %21 {offsets = [0, 5], sizes = [8, 1], strides = [1, 1]} : vector<8x8xf32> to vector<8x1xf32>
    %265 = vector.broadcast %264 : vector<8x1xf32> to vector<8x128xf32>
    %266 = arith.mulf %265, %263 : vector<8x128xf32>
    %267 = arith.addf %227, %266 : vector<8x128xf32>
    %c5_i32 = arith.constant 5 : i32
    %268 = vector.broadcast %c5_i32 : i32 to vector<8x1xi32>
    %269 = arith.cmpi sgt, %0, %268 : vector<8x1xi32>
    %270 = vector.shape_cast %269 : vector<8x1xi1> to vector<8x1xi1>
    %271 = vector.broadcast %270 : vector<8x1xi1> to vector<8x128xi1>
    %272 = arith.select %271, %263, %232 : vector<8x128xi1>, vector<8x128xf32>
    %c48 = arith.constant 48 : index
    %c0_54 = arith.constant 0 : index
    %273 = vector.load %arg11[%c48, %c0_54] : memref<64x384xf32, #tpu.memory_space<vmem>>, vector<8x384xf32>
    %274 = arith.truncf %272 : vector<8x128xf32> to vector<8x128xbf16>
    %cst_55 = arith.constant dense<0.000000e+00> : vector<8x384xf32>
    %275 = tpu.matmul %274, %29, %cst_55 {dimension_numbers = #tpu.dot_dimension_numbers<[1], [0], [0], [1], [0, 0, 1, 1], [], []>} : vector<8x128xbf16>, vector<128x384xbf16>, vector<8x384xf32> -> vector<8x384xf32>
    %276 = vector.extract_strided_slice %273 {offsets = [0, 0], sizes = [8, 128], strides = [1, 1]} : vector<8x384xf32> to vector<8x128xf32>
    %277 = vector.extract_strided_slice %275 {offsets = [0, 0], sizes = [8, 128], strides = [1, 1]} : vector<8x384xf32> to vector<8x128xf32>
    %278 = arith.addf %276, %277 : vector<8x128xf32>
    %279 = arith.negf %278 : vector<8x128xf32>
    %280 = math.exp %279 : vector<8x128xf32>
    %cst_56 = arith.constant 1.000000e+00 : f32
    %281 = vector.broadcast %cst_56 : f32 to vector<8x128xf32>
    %282 = arith.addf %281, %280 : vector<8x128xf32>
    %283 = arith.divf %281, %282 : vector<8x128xf32>
    %284 = vector.extract_strided_slice %273 {offsets = [0, 128], sizes = [8, 128], strides = [1, 1]} : vector<8x384xf32> to vector<8x128xf32>
    %285 = vector.extract_strided_slice %275 {offsets = [0, 128], sizes = [8, 128], strides = [1, 1]} : vector<8x384xf32> to vector<8x128xf32>
    %286 = arith.addf %284, %285 : vector<8x128xf32>
    %287 = arith.negf %286 : vector<8x128xf32>
    %288 = math.exp %287 : vector<8x128xf32>
    %cst_57 = arith.constant 1.000000e+00 : f32
    %289 = vector.broadcast %cst_57 : f32 to vector<8x128xf32>
    %290 = arith.addf %289, %288 : vector<8x128xf32>
    %291 = arith.divf %289, %290 : vector<8x128xf32>
    %292 = vector.extract_strided_slice %273 {offsets = [0, 256], sizes = [8, 128], strides = [1, 1]} : vector<8x384xf32> to vector<8x128xf32>
    %293 = vector.extract_strided_slice %275 {offsets = [0, 256], sizes = [8, 128], strides = [1, 1]} : vector<8x384xf32> to vector<8x128xf32>
    %294 = vector.broadcast %30 : vector<1x128xf32> to vector<8x128xf32>
    %295 = arith.addf %293, %294 : vector<8x128xf32>
    %296 = arith.mulf %283, %295 : vector<8x128xf32>
    %297 = arith.addf %292, %296 : vector<8x128xf32>
    %298 = math.tanh %297 : vector<8x128xf32>
    %cst_58 = arith.constant 1.000000e+00 : f32
    %299 = vector.broadcast %cst_58 : f32 to vector<8x128xf32>
    %300 = arith.subf %299, %291 : vector<8x128xf32>
    %301 = arith.mulf %300, %298 : vector<8x128xf32>
    %302 = arith.mulf %291, %272 : vector<8x128xf32>
    %303 = arith.addf %301, %302 : vector<8x128xf32>
    %304 = vector.extract_strided_slice %21 {offsets = [0, 6], sizes = [8, 1], strides = [1, 1]} : vector<8x8xf32> to vector<8x1xf32>
    %305 = vector.broadcast %304 : vector<8x1xf32> to vector<8x128xf32>
    %306 = arith.mulf %305, %303 : vector<8x128xf32>
    %307 = arith.addf %267, %306 : vector<8x128xf32>
    %c6_i32 = arith.constant 6 : i32
    %308 = vector.broadcast %c6_i32 : i32 to vector<8x1xi32>
    %309 = arith.cmpi sgt, %0, %308 : vector<8x1xi32>
    %310 = vector.shape_cast %309 : vector<8x1xi1> to vector<8x1xi1>
    %311 = vector.broadcast %310 : vector<8x1xi1> to vector<8x128xi1>
    %312 = arith.select %311, %303, %272 : vector<8x128xi1>, vector<8x128xf32>
    %c56 = arith.constant 56 : index
    %c0_59 = arith.constant 0 : index
    %313 = vector.load %arg11[%c56, %c0_59] : memref<64x384xf32, #tpu.memory_space<vmem>>, vector<8x384xf32>
    %314 = arith.truncf %312 : vector<8x128xf32> to vector<8x128xbf16>
    %cst_60 = arith.constant dense<0.000000e+00> : vector<8x384xf32>
    %315 = tpu.matmul %314, %29, %cst_60 {dimension_numbers = #tpu.dot_dimension_numbers<[1], [0], [0], [1], [0, 0, 1, 1], [], []>} : vector<8x128xbf16>, vector<128x384xbf16>, vector<8x384xf32> -> vector<8x384xf32>
    %316 = vector.extract_strided_slice %313 {offsets = [0, 0], sizes = [8, 128], strides = [1, 1]} : vector<8x384xf32> to vector<8x128xf32>
    %317 = vector.extract_strided_slice %315 {offsets = [0, 0], sizes = [8, 128], strides = [1, 1]} : vector<8x384xf32> to vector<8x128xf32>
    %318 = arith.addf %316, %317 : vector<8x128xf32>
    %319 = arith.negf %318 : vector<8x128xf32>
    %320 = math.exp %319 : vector<8x128xf32>
    %cst_61 = arith.constant 1.000000e+00 : f32
    %321 = vector.broadcast %cst_61 : f32 to vector<8x128xf32>
    %322 = arith.addf %321, %320 : vector<8x128xf32>
    %323 = arith.divf %321, %322 : vector<8x128xf32>
    %324 = vector.extract_strided_slice %313 {offsets = [0, 128], sizes = [8, 128], strides = [1, 1]} : vector<8x384xf32> to vector<8x128xf32>
    %325 = vector.extract_strided_slice %315 {offsets = [0, 128], sizes = [8, 128], strides = [1, 1]} : vector<8x384xf32> to vector<8x128xf32>
    %326 = arith.addf %324, %325 : vector<8x128xf32>
    %327 = arith.negf %326 : vector<8x128xf32>
    %328 = math.exp %327 : vector<8x128xf32>
    %cst_62 = arith.constant 1.000000e+00 : f32
    %329 = vector.broadcast %cst_62 : f32 to vector<8x128xf32>
    %330 = arith.addf %329, %328 : vector<8x128xf32>
    %331 = arith.divf %329, %330 : vector<8x128xf32>
    %332 = vector.extract_strided_slice %313 {offsets = [0, 256], sizes = [8, 128], strides = [1, 1]} : vector<8x384xf32> to vector<8x128xf32>
    %333 = vector.extract_strided_slice %315 {offsets = [0, 256], sizes = [8, 128], strides = [1, 1]} : vector<8x384xf32> to vector<8x128xf32>
    %334 = vector.broadcast %30 : vector<1x128xf32> to vector<8x128xf32>
    %335 = arith.addf %333, %334 : vector<8x128xf32>
    %336 = arith.mulf %323, %335 : vector<8x128xf32>
    %337 = arith.addf %332, %336 : vector<8x128xf32>
    %338 = math.tanh %337 : vector<8x128xf32>
    %cst_63 = arith.constant 1.000000e+00 : f32
    %339 = vector.broadcast %cst_63 : f32 to vector<8x128xf32>
    %340 = arith.subf %339, %331 : vector<8x128xf32>
    %341 = arith.mulf %340, %338 : vector<8x128xf32>
    %342 = arith.mulf %331, %312 : vector<8x128xf32>
    %343 = arith.addf %341, %342 : vector<8x128xf32>
    %344 = vector.extract_strided_slice %21 {offsets = [0, 7], sizes = [8, 1], strides = [1, 1]} : vector<8x8xf32> to vector<8x1xf32>
    %345 = vector.broadcast %344 : vector<8x1xf32> to vector<8x128xf32>
    %346 = arith.mulf %345, %343 : vector<8x128xf32>
    %347 = arith.addf %307, %346 : vector<8x128xf32>
    %c7_i32 = arith.constant 7 : i32
    %348 = vector.broadcast %c7_i32 : i32 to vector<8x1xi32>
    %349 = arith.cmpi sgt, %0, %348 : vector<8x1xi32>
    %350 = vector.shape_cast %349 : vector<8x1xi1> to vector<8x1xi1>
    %351 = vector.broadcast %350 : vector<8x1xi1> to vector<8x128xi1>
    %352 = arith.select %351, %343, %312 : vector<8x128xi1>, vector<8x128xf32>
    %353 = tpu.concatenate %352, %347 in 1 : vector<8x128xf32>, vector<8x128xf32> -> vector<8x256xf32>
    %354 = arith.truncf %353 : vector<8x256xf32> to vector<8x256xbf16>
    %c0_64 = arith.constant 0 : index
    %c0_65 = arith.constant 0 : index
    %355 = vector.load %arg7[%c0_64, %c0_65] : memref<256x128xbf16, #tpu.memory_space<vmem>>, vector<256x128xbf16>
    %cst_66 = arith.constant dense<0.000000e+00> : vector<8x128xf32>
    %356 = tpu.matmul %354, %355, %cst_66 {dimension_numbers = #tpu.dot_dimension_numbers<[1], [0], [0], [1], [0, 0, 1, 1], [], []>} : vector<8x256xbf16>, vector<256x128xbf16>, vector<8x128xf32> -> vector<8x128xf32>
    %c0_67 = arith.constant 0 : index
    %c0_68 = arith.constant 0 : index
    %357 = vector.load %arg8[%c0_67, %c0_68] : memref<1x128xf32, #tpu.memory_space<vmem>>, vector<1x128xf32>
    %358 = vector.broadcast %357 : vector<1x128xf32> to vector<8x128xf32>
    %359 = arith.addf %356, %358 : vector<8x128xf32>
    %c0_69 = arith.constant 0 : index
    %c0_70 = arith.constant 0 : index
    %360 = vector.load %arg9[%c0_69, %c0_70] : memref<8x128xf32, #tpu.memory_space<vmem>>, vector<8x128xf32>
    tpu.vector_store %arg9[%c0_69, %c0_70], %359 {strides = array<i32>} : memref<8x128xf32, #tpu.memory_space<vmem>>, vector<8x128xf32>,
    %c0_71 = arith.constant 0 : index
    %c0_72 = arith.constant 0 : index
    %361 = vector.load %arg10[%c0_71, %c0_72] : memref<8x128xf32, #tpu.memory_space<vmem>>, vector<8x128xf32>
    tpu.vector_store %arg10[%c0_71, %c0_72], %352 {strides = array<i32>} : memref<8x128xf32, #tpu.memory_space<vmem>>, vector<8x128xf32>,
    return
  }
}

</mosaic_0001>

<llo_original>
// kernel: tpu_custom_call.1
$region0: #{tpu_custom_call.1}
  #allocation0 [shape = 'u32[]', space=smem, size = 0x4, offset = 0x4, fixed_abs, tag = 'smem constant byte address 0x4 - core index']
  #allocation1 [shape = 'u32[144,128]{1,0:T(1,128)}', space=vmem, size = 0x12000, scoped, tag = 'internal scratch']
  #allocation2 [shape = 'f32[64,384]{1,0:T(8,128)}', space=vmem, size = 0x18000, scoped, tag = 'scratch operand']
  %s0 = inlined_call_operand.vmem [shape: f32[8,8], index: 0, kind: input, shape index: {}]
  %s1 = inlined_call_operand.vmem [shape: s32[8,1], index: 1, kind: input, shape index: {}]
  %s2 = inlined_call_operand.hbm [shape: bf16[64,128], index: 2, kind: input, shape index: {}]
  %s3 = inlined_call_operand.hbm [shape: bf16[128,384], index: 3, kind: input, shape index: {}]
  %s4 = inlined_call_operand.hbm [shape: bf16[128,384], index: 4, kind: input, shape index: {}]
  %s5 = inlined_call_operand.vmem [shape: f32[1,384], index: 5, kind: input, shape index: {}]
  %s6 = inlined_call_operand.vmem [shape: f32[1,128], index: 6, kind: input, shape index: {}]
  %s7 = inlined_call_operand.hbm [shape: bf16[256,128], index: 7, kind: input, shape index: {}]
  %s8 = inlined_call_operand.vmem [shape: f32[1,128], index: 8, kind: input, shape index: {}]
  %s9 = inlined_call_operand.hbm [shape: f32[8,128], index: 9, kind: output, shape index: {0}]
  %s10 = inlined_call_operand.hbm [shape: f32[8,128], index: 10, kind: output, shape index: {1}]
  %11 = xla_tuple %s9, %s10
  %s12 = sld [smem:[#allocation0]]
  $region70: #{tpu_custom_call.1} parent=0
    _
  %s14 = ssub.s32 1, %s12
  %s15 = scalar_select 0, %s14, %s12
  $region1: #{tpu_custom_call.1} parent=0
    #allocation3 [shape = 'u8[16384]{0}', space=vmem, size = 0x4000, scoped, tag = 'input window, operand 2, single buffered']
    #allocation4 [shape = 's32[1]{0}', space=sflag, size = 0x4, scoped, tag = 'scoped memory for tpu_custom_call.1']
    #allocation5 [shape = 's32[1]{0}', space=sflag, size = 0x4, scoped, tag = 'scoped memory for tpu_custom_call.1']
    #allocation6 [shape = 'u8[98304]{0}', space=vmem, size = 0x18000, scoped, tag = 'input window, operand 3, single buffered']
    #allocation7 [shape = 's32[1]{0}', space=sflag, size = 0x4, scoped, tag = 'scoped memory for tpu_custom_call.1']
    #allocation8 [shape = 'u8[98304]{0}', space=vmem, size = 0x18000, scoped, tag = 'input window, operand 4, single buffered']
    #allocation9 [shape = 'u8[65536]{0}', space=vmem, size = 0x10000, scoped, tag = 'input window, operand 7, single buffered']
    #allocation10 [shape = 's32[1]{0}', space=sflag, size = 0x4, scoped, tag = 'scoped memory for tpu_custom_call.1']
    #allocation11 [shape = 'u8[4096]{0}', space=vmem, size = 0x1000, scoped, tag = 'output window, operand 0, single buffered']
    #allocation12 [shape = 'u8[4096]{0}', space=vmem, size = 0x1000, scoped, tag = 'output window, operand 1, single buffered']
    #allocation13 [shape = 's32[1]{0}', space=sflag, size = 0x4, scoped, tag = 'scoped memory for tpu_custom_call.1']
    %16 = vsyncpa [#allocation4], 0
    %17 = vsyncpa [#allocation7], 0
    %18 = vsyncpa [#allocation10], 0
    %19 = vsyncpa [#allocation5], 0
    %20 = vsyncpa [#allocation13], 0
    // Predicated region
    $region2: #{tpu_custom_call.1} parent=1 // pred_check
      _
    $region3: #{tpu_custom_call.1} parent=1 // pred_check_branch
      %22 = sbr.rel (0) target = $region5
    $region4: #{tpu_custom_call.1} parent=1 // pred_region
      _
    $region5: #{tpu_custom_call.1} parent=1 // pred_fallthru
      _
    // Predicated region
    $region6: #{tpu_custom_call.1} parent=1 // pred_check
      _
    $region7: #{tpu_custom_call.1} parent=1 // pred_check_branch
      %24 = sbr.rel (0) target = $region9
    $region8: #{tpu_custom_call.1} parent=1 // pred_region
      _
    $region9: #{tpu_custom_call.1} parent=1 // pred_fallthru
      _
    // Predicated region
    $region10: #{tpu_custom_call.1} parent=1 // pred_check
      _
    $region11: #{tpu_custom_call.1} parent=1 // pred_check_branch
      %26 = sbr.rel (0) target = $region13
    $region12: #{tpu_custom_call.1} parent=1 // pred_region
      %s28 = ssub.s32 512, 512
      %29 = vsyncadd [#allocation4], %s28
      %s30 = sshll.u32 [#allocation3], 4
      %s31 = int_to_ptr.vmem [resolvable:$true] %s30
      %36 = dma.hbm_to_vmem [thread:$0]  %s2, 512, %s31, [#allocation4], 64, 64, 4
    $region13: #{tpu_custom_call.1} parent=1 // pred_fallthru
      _
    // Predicated region
    $region14: #{tpu_custom_call.1} parent=1 // pred_check
      _
    $region15: #{tpu_custom_call.1} parent=1 // pred_check_branch
      %38 = sbr.rel (0) target = $region17
    $region16: #{tpu_custom_call.1} parent=1 // pred_region
      %s40 = ssub.s32 3072, 3072
      %41 = vsyncadd [#allocation7], %s40
      %s42 = sshll.u32 [#allocation6], 4
      %s43 = int_to_ptr.vmem [resolvable:$true] %s42
      %48 = dma.hbm_to_vmem [thread:$0]  %s3, 3072, %s43, [#allocation7], 192, 192, 12
    $region17: #{tpu_custom_call.1} parent=1 // pred_fallthru
      _
    // Predicated region
    $region18: #{tpu_custom_call.1} parent=1 // pred_check
      _
    $region19: #{tpu_custom_call.1} parent=1 // pred_check_branch
      %50 = sbr.rel (0) target = $region21
    $region20: #{tpu_custom_call.1} parent=1 // pred_region
      %s52 = ssub.s32 3072, 3072
      %53 = vsyncadd [#allocation7], %s52
      %s54 = sshll.u32 [#allocation8], 4
      %s55 = int_to_ptr.vmem [resolvable:$true] %s54
      %60 = dma.hbm_to_vmem [thread:$0]  %s4, 3072, %s55, [#allocation7], 192, 192, 12
    $region21: #{tpu_custom_call.1} parent=1 // pred_fallthru
      _
    // Predicated region
    $region22: #{tpu_custom_call.1} parent=1 // pred_check
      _
    $region23: #{tpu_custom_call.1} parent=1 // pred_check_branch
      %62 = sbr.rel (0) target = $region25
    $region24: #{tpu_custom_call.1} parent=1 // pred_region
      _
    $region25: #{tpu_custom_call.1} parent=1 // pred_fallthru
      _
    // Predicated region
    $region26: #{tpu_custom_call.1} parent=1 // pred_check
      _
    $region27: #{tpu_custom_call.1} parent=1 // pred_check_branch
      %64 = sbr.rel (0) target = $region29
    $region28: #{tpu_custom_call.1} parent=1 // pred_region
      _
    $region29: #{tpu_custom_call.1} parent=1 // pred_fallthru
      _
    // Predicated region
    $region30: #{tpu_custom_call.1} parent=1 // pred_check
      _
    $region31: #{tpu_custom_call.1} parent=1 // pred_check_branch
      %66 = sbr.rel (0) target = $region33
    $region32: #{tpu_custom_call.1} parent=1 // pred_region
      %s68 = ssub.s32 2048, 2048
      %69 = vsyncadd [#allocation10], %s68
      %s70 = sshll.u32 [#allocation9], 4
      %s71 = int_to_ptr.vmem [resolvable:$true] %s70
      %76 = dma.hbm_to_vmem [thread:$0]  %s7, 2048, %s71, [#allocation10], 64, 64, 4
    $region33: #{tpu_custom_call.1} parent=1 // pred_fallthru
      _
    // Predicated region
    $region34: #{tpu_custom_call.1} parent=1 // pred_check
      _
    $region35: #{tpu_custom_call.1} parent=1 // pred_check_branch
      %78 = sbr.rel (0) target = $region37
    $region36: #{tpu_custom_call.1} parent=1 // pred_region
      _
    $region37: #{tpu_custom_call.1} parent=1 // pred_fallthru
      _
    // Predicated region
    $region38: #{tpu_custom_call.1} parent=1 // pred_check
      _
    $region39: #{tpu_custom_call.1} parent=1 // pred_check_branch
      %80 = sbr.rel (0) target = $region41
    $region40: #{tpu_custom_call.1} parent=1 // pred_region
      %81 = dma.done [#allocation4], 512
    $region41: #{tpu_custom_call.1} parent=1 // pred_fallthru
      _
    // Predicated region
    $region42: #{tpu_custom_call.1} parent=1 // pred_check
      _
    $region43: #{tpu_custom_call.1} parent=1 // pred_check_branch
      %83 = sbr.rel (0) target = $region45
    $region44: #{tpu_custom_call.1} parent=1 // pred_region
      %84 = dma.done [#allocation7], 3072
    $region45: #{tpu_custom_call.1} parent=1 // pred_fallthru
      _
    // Predicated region
    $region46: #{tpu_custom_call.1} parent=1 // pred_check
      _
    $region47: #{tpu_custom_call.1} parent=1 // pred_check_branch
      %86 = sbr.rel (0) target = $region49
    $region48: #{tpu_custom_call.1} parent=1 // pred_region
      %87 = dma.done [#allocation7], 3072
    $region49: #{tpu_custom_call.1} parent=1 // pred_fallthru
      _
    // Predicated region
    $region50: #{tpu_custom_call.1} parent=1 // pred_check
      _
    $region51: #{tpu_custom_call.1} parent=1 // pred_check_branch
      %89 = sbr.rel (0) target = $region53
    $region52: #{tpu_custom_call.1} parent=1 // pred_region
      %90 = dma.done [#allocation10], 2048
    $region53: #{tpu_custom_call.1} parent=1 // pred_fallthru
      _
    %v92 = vld [vmem:[%s1] sm:$0xff]
    %v93 = vld [vmem:[%s0] sm:$0xff]
    %vm94 = vcmp.eq.f32.partialorder %v93, -1.0
    %v95 = vsub.f32 0.0, %v93
    %v96 = vsel %vm94, -1e+10, %v95
    %vm97 = vcmask 64512
    %v98 = vsel %vm97, %v96, -inf
    %99 = vmax.xlane.f32.xlu0 %v98
    %v100 = vpop.xlane.xlu0 %99
    %v101 = vsub.f32 %v96, %v100
    %v102 = vmul.f32 %v101, 1.442695
    %v103 = vpow.pop %v102
    %v104 = vsel %vm97, %v103, 0.0
    %105 = vadd.xlane.f32.xlu0 %v104
    %v106 = vpop.xlane.xlu0 %105
    %v107 = vrcp.pop %v106
    %v108 = vmul.f32 %v103, %v107
    %v109 = vlaneseq
    %v110 = vand.u32 %v109, 127
    %111 = vset.pattern.permute.xlu0 0
    %112 = vperm.xlu0 %111, %v92
    %v113 = vpop.permute.xlu0 %112
    %vm114 = vcmp.lt.s32.totalorder %v110, %v113
    %v115 = vsel %vm114, %v108, 0.0
    %v116 = vld [vmem:[#allocation3] sm:$0xf]
    %v117 = vld [vmem:[#allocation3 + $0x4] sm:$0xf]
    %v118 = vld [vmem:[#allocation3 + $0x8] sm:$0xf]
    %v119 = vld [vmem:[#allocation3 + $0xc] sm:$0xf]
    %v120 = vld [vmem:[#allocation3 + $0x10] sm:$0xf]
    %v121 = vld [vmem:[#allocation3 + $0x14] sm:$0xf]
    %v122 = vld [vmem:[#allocation3 + $0x18] sm:$0xf]
    %v123 = vld [vmem:[#allocation3 + $0x1c] sm:$0xf]
    %v124 = vld [vmem:[#allocation6] sm:$0xff]
    %v125 = vld [vmem:[#allocation6 + $0x8] sm:$0xf]
    %v126 = vld [vmem:[#allocation6 + $0xc] sm:$0xff]
    %v127 = vld [vmem:[#allocation6 + $0x14] sm:$0xf]
    %v128 = vld [vmem:[#allocation6 + $0x18] sm:$0xff]
    %v129 = vld [vmem:[#allocation6 + $0x20] sm:$0xf]
    %v130 = vld [vmem:[#allocation6 + $0x24] sm:$0xff]
    %v131 = vld [vmem:[#allocation6 + $0x2c] sm:$0xf]
    %v132 = vld [vmem:[#allocation6 + $0x30] sm:$0xff]
    %v133 = vld [vmem:[#allocation6 + $0x38] sm:$0xf]
    %v134 = vld [vmem:[#allocation6 + $0x3c] sm:$0xff]
    %v135 = vld [vmem:[#allocation6 + $0x44] sm:$0xf]
    %v136 = vld [vmem:[#allocation6 + $0x48] sm:$0xff]
    %v137 = vld [vmem:[#allocation6 + $0x50] sm:$0xf]
    %v138 = vld [vmem:[#allocation6 + $0x54] sm:$0xff]
    %v139 = vld [vmem:[#allocation6 + $0x5c] sm:$0xf]
    %v140 = vld [vmem:[#allocation6 + $0x60] sm:$0xff]
    %v141 = vld [vmem:[#allocation6 + $0x68] sm:$0xf]
    %v142 = vld [vmem:[#allocation6 + $0x6c] sm:$0xff]
    %v143 = vld [vmem:[#allocation6 + $0x74] sm:$0xf]
    %v144 = vld [vmem:[#allocation6 + $0x78] sm:$0xff]
    %v145 = vld [vmem:[#allocation6 + $0x80] sm:$0xf]
    %v146 = vld [vmem:[#allocation6 + $0x84] sm:$0xff]
    %v147 = vld [vmem:[#allocation6 + $0x8c] sm:$0xf]
    %v148 = vld [vmem:[#allocation6 + $0x90] sm:$0xff]
    %v149 = vld [vmem:[#allocation6 + $0x98] sm:$0xf]
    %v150 = vld [vmem:[#allocation6 + $0x9c] sm:$0xff]
    %v151 = vld [vmem:[#allocation6 + $0xa4] sm:$0xf]
    %v152 = vld [vmem:[#allocation6 + $0xa8] sm:$0xff]
    %v153 = vld [vmem:[#allocation6 + $0xb0] sm:$0xf]
    %v154 = vld [vmem:[#allocation6 + $0xb4] sm:$0xff]
    %v155 = vld [vmem:[#allocation6 + $0xbc] sm:$0xf]
    %v156 = vld [vmem:[%s5] sm:$0x7]
    %v158 = vlaneseq
    %v159 = vshrl.u32 %v158, 7
    %v160 = vsub.s32 0, %v159
    %v161 = vrot.slane %v156, %v160
    %v162 = vlaneseq
    %v163 = vshrl.u32 %v162, 7
    %v164 = vsub.s32 1, %v163
    %v165 = vrot.slane %v156, %v164
    %v166 = vlaneseq
    %v167 = vshrl.u32 %v166, 7
    %v168 = vsub.s32 2, %v167
    %v169 = vrot.slane %v156, %v168
    %v181 = vunpack.c.l.b16 %v116
    %v182 = vunpack.c.l.b16 %v117
    %v183 = vunpack.c.l.b16 %v118
    %v184 = vunpack.c.l.b16 %v119
    %v185 = vunpack.c.l.b16 %v120
    %v186 = vunpack.c.l.b16 %v121
    %v187 = vunpack.c.l.b16 %v122
    %v188 = vunpack.c.l.b16 %v123
    %v189 = vpack.c.b16 %v182, %v181
    %v190 = vpack.c.b16 %v184, %v183
    %v191 = vpack.c.b16 %v186, %v185
    %v192 = vpack.c.b16 %v188, %v187
    %v229 = vunpack.c.l.b16 %v124
    %v230 = vunpack.c.h.b16 %v124
    %v231 = vunpack.c.l.b16 %v125
    %v232 = vunpack.c.l.b16 %v126
    %v233 = vunpack.c.h.b16 %v126
    %v234 = vunpack.c.l.b16 %v127
    %v235 = vunpack.c.l.b16 %v128
    %v236 = vunpack.c.h.b16 %v128
    %v237 = vunpack.c.l.b16 %v129
    %v238 = vunpack.c.l.b16 %v130
    %v239 = vunpack.c.h.b16 %v130
    %v240 = vunpack.c.l.b16 %v131
    %v241 = vunpack.c.l.b16 %v132
    %v242 = vunpack.c.h.b16 %v132
    %v243 = vunpack.c.l.b16 %v133
    %v244 = vunpack.c.l.b16 %v134
    %v245 = vunpack.c.h.b16 %v134
    %v246 = vunpack.c.l.b16 %v135
    %v247 = vunpack.c.l.b16 %v136
    %v248 = vunpack.c.h.b16 %v136
    %v249 = vunpack.c.l.b16 %v137
    %v250 = vunpack.c.l.b16 %v138
    %v251 = vunpack.c.h.b16 %v138
    %v252 = vunpack.c.l.b16 %v139
    %v253 = vunpack.c.l.b16 %v140
    %v254 = vunpack.c.h.b16 %v140
    %v255 = vunpack.c.l.b16 %v141
    %v256 = vunpack.c.l.b16 %v142
    %v257 = vunpack.c.h.b16 %v142
    %v258 = vunpack.c.l.b16 %v143
    %v259 = vunpack.c.l.b16 %v144
    %v260 = vunpack.c.h.b16 %v144
    %v261 = vunpack.c.l.b16 %v145
    %v262 = vunpack.c.l.b16 %v146
    %v263 = vunpack.c.h.b16 %v146
    %v264 = vunpack.c.l.b16 %v147
    %v265 = vunpack.c.l.b16 %v148
    %v266 = vunpack.c.h.b16 %v148
    %v267 = vunpack.c.l.b16 %v149
    %v268 = vunpack.c.l.b16 %v150
    %v269 = vunpack.c.h.b16 %v150
    %v270 = vunpack.c.l.b16 %v151
    %v271 = vunpack.c.l.b16 %v152
    %v272 = vunpack.c.h.b16 %v152
    %v273 = vunpack.c.l.b16 %v153
    %v274 = vunpack.c.l.b16 %v154
    %v275 = vunpack.c.h.b16 %v154
    %v276 = vunpack.c.l.b16 %v155
    %v277 = vpack.c.b16 %v232, %v229
    %v278 = vpack.c.b16 %v233, %v230
    %v279 = vpack.c.b16 %v234, %v231
    %v280 = vpack.c.b16 %v238, %v235
    %v281 = vpack.c.b16 %v239, %v236
    %v282 = vpack.c.b16 %v240, %v237
    %v283 = vpack.c.b16 %v244, %v241
    %v284 = vpack.c.b16 %v245, %v242
    %v285 = vpack.c.b16 %v246, %v243
    %v286 = vpack.c.b16 %v250, %v247
    %v287 = vpack.c.b16 %v251, %v248
    %v288 = vpack.c.b16 %v252, %v249
    %v289 = vpack.c.b16 %v256, %v253
    %v290 = vpack.c.b16 %v257, %v254
    %v291 = vpack.c.b16 %v258, %v255
    %v292 = vpack.c.b16 %v262, %v259
    %v293 = vpack.c.b16 %v263, %v260
    %v294 = vpack.c.b16 %v264, %v261
    %v295 = vpack.c.b16 %v268, %v265
    %v296 = vpack.c.b16 %v269, %v266
    %v297 = vpack.c.b16 %v270, %v267
    %v298 = vpack.c.b16 %v274, %v271
    %v299 = vpack.c.b16 %v275, %v272
    %v300 = vpack.c.b16 %v276, %v273
    %325 = vmatprep.subr.bf16.mxu0 %v299
    %326 = vmatpush1.bf16.msra.mxu0 %v298
    %327 = vmatprep.subr.bf16.mxu0 %v296
    %328 = vmatpush1.bf16.msra.mxu0 %v295
    %329 = vmatprep.subr.bf16.mxu0 %v293
    %330 = vmatpush1.bf16.msra.mxu0 %v292
    %331 = vmatprep.subr.bf16.mxu0 %v290
    %332 = vmatpush1.bf16.msra.mxu0 %v289
    %333 = vmatprep.subr.bf16.mxu0 %v287
    %334 = vmatpush1.bf16.msra.mxu0 %v286
    %335 = vmatprep.subr.bf16.mxu0 %v284
    %336 = vmatpush1.bf16.msra.mxu0 %v283
    %337 = vmatprep.subr.bf16.mxu0 %v281
    %338 = vmatpush1.bf16.msra.mxu0 %v280
    %339 = vmatprep.subr.bf16.mxu0 %v278
    %340 = vmatpush1.bf16.msra.mxu0 %v277
    %341 = vmatprep.subr.bf16.mxu0 0
    %342 = vmatpush2.bf16.msra.mxu0 0
    %343 = vmatprep.subr.bf16.mxu0 0
    %344 = vmatpush2.bf16.msra.mxu0 0
    %345 = vmatprep.subr.bf16.mxu0 0
    %346 = vmatpush2.bf16.msra.mxu0 0
    %347 = vmatprep.subr.bf16.mxu0 0
    %348 = vmatpush2.bf16.msra.mxu0 0
    %349 = vmatprep.subr.bf16.mxu0 0
    %350 = vmatpush2.bf16.msra.mxu0 0
    %351 = vmatprep.subr.bf16.mxu0 0
    %352 = vmatpush2.bf16.msra.mxu0 0
    %353 = vmatprep.subr.bf16.mxu0 0
    %354 = vmatpush2.bf16.msra.mxu0 0
    %355 = vmatprep.subr.bf16.mxu0 0
    %356 = vmatpush2.bf16.msra.mxu0 0
    %357 = vmatprep.mubr.bf16.mxu0 0
    %358 = vmatmul.mubr.bf16.gmra.mxu0 %v189
    %v359 = vpop.f32.mrf.mxu0
    %v360 = vadd.f32 %v161, %v359
    %v361 = vpop.f32.mrf.mxu0
    %v362 = vadd.f32 %v165, %v361
    %v363 = vpop.f32.mrf.mxu0
    %v364 = vadd.f32 %v161, %v363
    %v365 = vpop.f32.mrf.mxu0
    %v366 = vadd.f32 %v165, %v365
    %367 = vmatprep.mubr.bf16.mxu0 0
    %368 = vmatmul.mubr.bf16.gmra.mxu0 %v190
    %v369 = vpop.f32.mrf.mxu0
    %v370 = vadd.f32 %v161, %v369
    %v371 = vpop.f32.mrf.mxu0
    %v372 = vadd.f32 %v165, %v371
    %v373 = vpop.f32.mrf.mxu0
    %v374 = vadd.f32 %v161, %v373
    %v375 = vpop.f32.mrf.mxu0
    %v376 = vadd.f32 %v165, %v375
    %377 = vmatprep.mubr.bf16.mxu0 0
    %378 = vmatmul.mubr.bf16.gmra.mxu0 %v191
    %v379 = vpop.f32.mrf.mxu0
    %v380 = vadd.f32 %v161, %v379
    %v381 = vpop.f32.mrf.mxu0
    %v382 = vadd.f32 %v165, %v381
    %v383 = vpop.f32.mrf.mxu0
    %v384 = vadd.f32 %v161, %v383
    %v385 = vpop.f32.mrf.mxu0
    %v386 = vadd.f32 %v165, %v385
    %387 = vmatprep.mubr.bf16.mxu0 0
    %388 = vmatmul.mubr.bf16.gmra.mxu0 %v192
    %v389 = vpop.f32.mrf.mxu0
    %v390 = vadd.f32 %v161, %v389
    %v391 = vpop.f32.mrf.mxu0
    %v392 = vadd.f32 %v165, %v391
    %v393 = vpop.f32.mrf.mxu0
    %v394 = vadd.f32 %v161, %v393
    %v395 = vpop.f32.mrf.mxu0
    %v396 = vadd.f32 %v165, %v395
    %397 = vdwg.mxu0
    %398 = vmatprep.subr.bf16.mxu0 0
    %399 = vmatpush1.bf16.msra.mxu0 %v300
    %400 = vmatprep.subr.bf16.mxu0 0
    %401 = vmatpush1.bf16.msra.mxu0 %v297
    %402 = vmatprep.subr.bf16.mxu0 0
    %403 = vmatpush1.bf16.msra.mxu0 %v294
    %404 = vmatprep.subr.bf16.mxu0 0
    %405 = vmatpush1.bf16.msra.mxu0 %v291
    %406 = vmatprep.subr.bf16.mxu0 0
    %407 = vmatpush1.bf16.msra.mxu0 %v288
    %408 = vmatprep.subr.bf16.mxu0 0
    %409 = vmatpush1.bf16.msra.mxu0 %v285
    %410 = vmatprep.subr.bf16.mxu0 0
    %411 = vmatpush1.bf16.msra.mxu0 %v282
    %412 = vmatprep.subr.bf16.mxu0 0
    %413 = vmatpush1.bf16.msra.mxu0 %v279
    %414 = vmatprep.subr.bf16.mxu0 0
    %415 = vmatpush2.bf16.msra.mxu0 0
    %416 = vmatprep.subr.bf16.mxu0 0
    %417 = vmatpush2.bf16.msra.mxu0 0
    %418 = vmatprep.subr.bf16.mxu0 0
    %419 = vmatpush2.bf16.msra.mxu0 0
    %420 = vmatprep.subr.bf16.mxu0 0
    %421 = vmatpush2.bf16.msra.mxu0 0
    %422 = vmatprep.subr.bf16.mxu0 0
    %423 = vmatpush2.bf16.msra.mxu0 0
    %424 = vmatprep.subr.bf16.mxu0 0
    %425 = vmatpush2.bf16.msra.mxu0 0
    %426 = vmatprep.subr.bf16.mxu0 0
    %427 = vmatpush2.bf16.msra.mxu0 0
    %428 = vmatprep.subr.bf16.mxu0 0
    %429 = vmatpush2.bf16.msra.mxu0 0
    %430 = vmatprep.mubr.bf16.mxu0 0
    %431 = vmatmul.mubr.bf16.gmra.mxu0 %v189
    %v432 = vpop.f32.mrf.mxu0
    %v433 = vadd.f32 %v169, %v432
    %v434 = vpop.f32.mrf.mxu0
    %v435 = vpop.f32.mrf.mxu0
    %v436 = vadd.f32 %v169, %v435
    %v437 = vpop.f32.mrf.mxu0
    %438 = vmatprep.mubr.bf16.mxu0 0
    %439 = vmatmul.mubr.bf16.gmra.mxu0 %v190
    %v440 = vpop.f32.mrf.mxu0
    %v441 = vadd.f32 %v169, %v440
    %v442 = vpop.f32.mrf.mxu0
    %v443 = vpop.f32.mrf.mxu0
    %v444 = vadd.f32 %v169, %v443
    %v445 = vpop.f32.mrf.mxu0
    %446 = vmatprep.mubr.bf16.mxu0 0
    %447 = vmatmul.mubr.bf16.gmra.mxu0 %v191
    %v448 = vpop.f32.mrf.mxu0
    %v449 = vadd.f32 %v169, %v448
    %v450 = vpop.f32.mrf.mxu0
    %v451 = vpop.f32.mrf.mxu0
    %v452 = vadd.f32 %v169, %v451
    %v453 = vpop.f32.mrf.mxu0
    %454 = vmatprep.mubr.bf16.mxu0 0
    %455 = vmatmul.mubr.bf16.gmra.mxu0 %v192
    %v456 = vpop.f32.mrf.mxu0
    %v457 = vadd.f32 %v169, %v456
    %v458 = vpop.f32.mrf.mxu0
    %v459 = vpop.f32.mrf.mxu0
    %v460 = vadd.f32 %v169, %v459
    %v461 = vpop.f32.mrf.mxu0
    %462 = vdwg.mxu0
    %463 = vst [vmem:[#allocation2] sm:$0xff] %v360
    %464 = vst [vmem:[#allocation2 + $0x8] sm:$0xff] %v362
    %465 = vst [vmem:[#allocation2 + $0x10] sm:$0xff] %v433
    %466 = vst [vmem:[#allocation2 + $0x18] sm:$0xff] %v364
    %467 = vst [vmem:[#allocation2 + $0x20] sm:$0xff] %v366
    %468 = vst [vmem:[#allocation2 + $0x28] sm:$0xff] %v436
    %469 = vst [vmem:[#allocation2 + $0x30] sm:$0xff] %v370
    %470 = vst [vmem:[#allocation2 + $0x38] sm:$0xff] %v372
    %471 = vst [vmem:[#allocation2 + $0x40] sm:$0xff] %v441
    %472 = vst [vmem:[#allocation2 + $0x48] sm:$0xff] %v374
    %473 = vst [vmem:[#allocation2 + $0x50] sm:$0xff] %v376
    %474 = vst [vmem:[#allocation2 + $0x58] sm:$0xff] %v444
    %475 = vst [vmem:[#allocation2 + $0x60] sm:$0xff] %v380
    %476 = vst [vmem:[#allocation2 + $0x68] sm:$0xff] %v382
    %477 = vst [vmem:[#allocation2 + $0x70] sm:$0xff] %v449
    %478 = vst [vmem:[#allocation2 + $0x78] sm:$0xff] %v384
    %479 = vst [vmem:[#allocation2 + $0x80] sm:$0xff] %v386
    %480 = vst [vmem:[#allocation2 + $0x88] sm:$0xff] %v452
    %481 = vst [vmem:[#allocation2 + $0x90] sm:$0xff] %v390
    %482 = vst [vmem:[#allocation2 + $0x98] sm:$0xff] %v392
    %483 = vst [vmem:[#allocation2 + $0xa0] sm:$0xff] %v457
    %484 = vst [vmem:[#allocation2 + $0xa8] sm:$0xff] %v394
    %485 = vst [vmem:[#allocation2 + $0xb0] sm:$0xff] %v396
    %486 = vst [vmem:[#allocation2 + $0xb8] sm:$0xff] %v460
    %v487 = vld [vmem:[#allocation8] sm:$0xff]
    %v488 = vld [vmem:[#allocation8 + $0x8] sm:$0xf]
    %v489 = vld [vmem:[#allocation8 + $0xc] sm:$0xff]
    %v490 = vld [vmem:[#allocation8 + $0x14] sm:$0xf]
    %v491 = vld [vmem:[#allocation8 + $0x18] sm:$0xff]
    %v492 = vld [vmem:[#allocation8 + $0x20] sm:$0xf]
    %v493 = vld [vmem:[#allocation8 + $0x24] sm:$0xff]
    %v494 = vld [vmem:[#allocation8 + $0x2c] sm:$0xf]
    %v495 = vld [vmem:[#allocation8 + $0x30] sm:$0xff]
    %v496 = vld [vmem:[#allocation8 + $0x38] sm:$0xf]
    %v497 = vld [vmem:[#allocation8 + $0x3c] sm:$0xff]
    %v498 = vld [vmem:[#allocation8 + $0x44] sm:$0xf]
    %v499 = vld [vmem:[#allocation8 + $0x48] sm:$0xff]
    %v500 = vld [vmem:[#allocation8 + $0x50] sm:$0xf]
    %v501 = vld [vmem:[#allocation8 + $0x54] sm:$0xff]
    %v502 = vld [vmem:[#allocation8 + $0x5c] sm:$0xf]
    %v503 = vld [vmem:[#allocation8 + $0x60] sm:$0xff]
    %v504 = vld [vmem:[#allocation8 + $0x68] sm:$0xf]
    %v505 = vld [vmem:[#allocation8 + $0x6c] sm:$0xff]
    %v506 = vld [vmem:[#allocation8 + $0x74] sm:$0xf]
    %v507 = vld [vmem:[#allocation8 + $0x78] sm:$0xff]
    %v508 = vld [vmem:[#allocation8 + $0x80] sm:$0xf]
    %v509 = vld [vmem:[#allocation8 + $0x84] sm:$0xff]
    %v510 = vld [vmem:[#allocation8 + $0x8c] sm:$0xf]
    %v511 = vld [vmem:[#allocation8 + $0x90] sm:$0xff]
    %v512 = vld [vmem:[#allocation8 + $0x98] sm:$0xf]
    %v513 = vld [vmem:[#allocation8 + $0x9c] sm:$0xff]
    %v514 = vld [vmem:[#allocation8 + $0xa4] sm:$0xf]
    %v515 = vld [vmem:[#allocation8 + $0xa8] sm:$0xff]
    %v516 = vld [vmem:[#allocation8 + $0xb0] sm:$0xf]
    %v517 = vld [vmem:[#allocation8 + $0xb4] sm:$0xff]
    %v518 = vld [vmem:[#allocation8 + $0xbc] sm:$0xf]
    %v519 = vld [vmem:[%s6] sm:$0x1]
    %v520 = vld [vmem:[#allocation2] sm:$0xff]
    %v521 = vld [vmem:[#allocation2 + $0x8] sm:$0xff]
    %v522 = vld [vmem:[#allocation2 + $0x10] sm:$0xff]
    %v555 = vunpack.c.l.b16 %v487
    %v556 = vunpack.c.h.b16 %v487
    %v557 = vunpack.c.l.b16 %v488
    %v558 = vunpack.c.l.b16 %v489
    %v559 = vunpack.c.h.b16 %v489
    %v560 = vunpack.c.l.b16 %v490
    %v561 = vunpack.c.l.b16 %v491
    %v562 = vunpack.c.h.b16 %v491
    %v563 = vunpack.c.l.b16 %v492
    %v564 = vunpack.c.l.b16 %v493
    %v565 = vunpack.c.h.b16 %v493
    %v566 = vunpack.c.l.b16 %v494
    %v567 = vunpack.c.l.b16 %v495
    %v568 = vunpack.c.h.b16 %v495
    %v569 = vunpack.c.l.b16 %v496
    %v570 = vunpack.c.l.b16 %v497
    %v571 = vunpack.c.h.b16 %v497
    %v572 = vunpack.c.l.b16 %v498
    %v573 = vunpack.c.l.b16 %v499
    %v574 = vunpack.c.h.b16 %v499
    %v575 = vunpack.c.l.b16 %v500
    %v576 = vunpack.c.l.b16 %v501
    %v577 = vunpack.c.h.b16 %v501
    %v578 = vunpack.c.l.b16 %v502
    %v579 = vunpack.c.l.b16 %v503
    %v580 = vunpack.c.h.b16 %v503
    %v581 = vunpack.c.l.b16 %v504
    %v582 = vunpack.c.l.b16 %v505
    %v583 = vunpack.c.h.b16 %v505
    %v584 = vunpack.c.l.b16 %v506
    %v585 = vunpack.c.l.b16 %v507
    %v586 = vunpack.c.h.b16 %v507
    %v587 = vunpack.c.l.b16 %v508
    %v588 = vunpack.c.l.b16 %v509
    %v589 = vunpack.c.h.b16 %v509
    %v590 = vunpack.c.l.b16 %v510
    %v591 = vunpack.c.l.b16 %v511
    %v592 = vunpack.c.h.b16 %v511
    %v593 = vunpack.c.l.b16 %v512
    %v594 = vunpack.c.l.b16 %v513
    %v595 = vunpack.c.h.b16 %v513
    %v596 = vunpack.c.l.b16 %v514
    %v597 = vunpack.c.l.b16 %v515
    %v598 = vunpack.c.h.b16 %v515
    %v599 = vunpack.c.l.b16 %v516
    %v600 = vunpack.c.l.b16 %v517
    %v601 = vunpack.c.h.b16 %v517
    %v602 = vunpack.c.l.b16 %v518
    %v603 = vpack.c.b16 %v558, %v555
    %v604 = vpack.c.b16 %v559, %v556
    %v605 = vpack.c.b16 %v560, %v557
    %v606 = vpack.c.b16 %v564, %v561
    %v607 = vpack.c.b16 %v565, %v562
    %v608 = vpack.c.b16 %v566, %v563
    %v609 = vpack.c.b16 %v570, %v567
    %v610 = vpack.c.b16 %v571, %v568
    %v611 = vpack.c.b16 %v572, %v569
    %v612 = vpack.c.b16 %v576, %v573
    %v613 = vpack.c.b16 %v577, %v574
    %v614 = vpack.c.b16 %v578, %v575
    %v615 = vpack.c.b16 %v582, %v579
    %v616 = vpack.c.b16 %v583, %v580
    %v617 = vpack.c.b16 %v584, %v581
    %v618 = vpack.c.b16 %v588, %v585
    %v619 = vpack.c.b16 %v589, %v586
    %v620 = vpack.c.b16 %v590, %v587
    %v621 = vpack.c.b16 %v594, %v591
    %v622 = vpack.c.b16 %v595, %v592
    %v623 = vpack.c.b16 %v596, %v593
    %v624 = vpack.c.b16 %v600, %v597
    %v625 = vpack.c.b16 %v601, %v598
    %v626 = vpack.c.b16 %v602, %v599
    %651 = vmatprep.subr.bf16.mxu0 %v625
    %652 = vmatpush1.bf16.msra.mxu0 %v624
    %653 = vmatprep.subr.bf16.mxu0 %v622
    %654 = vmatpush1.bf16.msra.mxu0 %v621
    %655 = vmatprep.subr.bf16.mxu0 %v619
    %656 = vmatpush1.bf16.msra.mxu0 %v618
    %657 = vmatprep.subr.bf16.mxu0 %v616
    %658 = vmatpush1.bf16.msra.mxu0 %v615
    %659 = vmatprep.subr.bf16.mxu0 %v613
    %660 = vmatpush1.bf16.msra.mxu0 %v612
    %661 = vmatprep.subr.bf16.mxu0 %v610
    %662 = vmatpush1.bf16.msra.mxu0 %v609
    %663 = vmatprep.subr.bf16.mxu0 %v607
    %664 = vmatpush1.bf16.msra.mxu0 %v606
    %665 = vmatprep.subr.bf16.mxu0 %v604
    %666 = vmatpush1.bf16.msra.mxu0 %v603
    %667 = vmatprep.subr.bf16.mxu0 0
    %668 = vmatpush2.bf16.msra.mxu0 0
    %669 = vmatprep.subr.bf16.mxu0 0
    %670 = vmatpush2.bf16.msra.mxu0 0
    %671 = vmatprep.subr.bf16.mxu0 0
    %672 = vmatpush2.bf16.msra.mxu0 0
    %673 = vmatprep.subr.bf16.mxu0 0
    %674 = vmatpush2.bf16.msra.mxu0 0
    %675 = vmatprep.subr.bf16.mxu0 0
    %676 = vmatpush2.bf16.msra.mxu0 0
    %677 = vmatprep.subr.bf16.mxu0 0
    %678 = vmatpush2.bf16.msra.mxu0 0
    %679 = vmatprep.subr.bf16.mxu0 0
    %680 = vmatpush2.bf16.msra.mxu0 0
    %681 = vmatprep.subr.bf16.mxu0 0
    %682 = vmatpush2.bf16.msra.mxu0 0
    %683 = vmatprep.mubr.bf16.mxu0 0
    %684 = vmatmul.mubr.bf16.gmra.mxu0 0
    %v685 = vpop.f32.mrf.mxu0
    %v686 = vadd.f32 0.0, %v685
    %v687 = vpop.f32.mrf.mxu0
    %v688 = vadd.f32 0.0, %v687
    %v689 = vpop.f32.mrf.mxu0
    %v690 = vpop.f32.mrf.mxu0
    %691 = vdwg.mxu0
    %692 = vmatprep.subr.bf16.mxu0 0
    %693 = vmatpush1.bf16.msra.mxu0 %v626
    %694 = vmatprep.subr.bf16.mxu0 0
    %695 = vmatpush1.bf16.msra.mxu0 %v623
    %696 = vmatprep.subr.bf16.mxu0 0
    %697 = vmatpush1.bf16.msra.mxu0 %v620
    %698 = vmatprep.subr.bf16.mxu0 0
    %699 = vmatpush1.bf16.msra.mxu0 %v617
    %700 = vmatprep.subr.bf16.mxu0 0
    %701 = vmatpush1.bf16.msra.mxu0 %v614
    %702 = vmatprep.subr.bf16.mxu0 0
    %703 = vmatpush1.bf16.msra.mxu0 %v611
    %704 = vmatprep.subr.bf16.mxu0 0
    %705 = vmatpush1.bf16.msra.mxu0 %v608
    %706 = vmatprep.subr.bf16.mxu0 0
    %707 = vmatpush1.bf16.msra.mxu0 %v605
    %708 = vmatprep.subr.bf16.mxu0 0
    %709 = vmatpush2.bf16.msra.mxu0 0
    %710 = vmatprep.subr.bf16.mxu0 0
    %711 = vmatpush2.bf16.msra.mxu0 0
    %712 = vmatprep.subr.bf16.mxu0 0
    %713 = vmatpush2.bf16.msra.mxu0 0
    %714 = vmatprep.subr.bf16.mxu0 0
    %715 = vmatpush2.bf16.msra.mxu0 0
    %716 = vmatprep.subr.bf16.mxu0 0
    %717 = vmatpush2.bf16.msra.mxu0 0
    %718 = vmatprep.subr.bf16.mxu0 0
    %719 = vmatpush2.bf16.msra.mxu0 0
    %720 = vmatprep.subr.bf16.mxu0 0
    %721 = vmatpush2.bf16.msra.mxu0 0
    %722 = vmatprep.subr.bf16.mxu0 0
    %723 = vmatpush2.bf16.msra.mxu0 0
    %724 = vmatprep.mubr.bf16.mxu0 0
    %725 = vmatmul.mubr.bf16.gmra.mxu0 0
    %v726 = vpop.f32.mrf.mxu0
    %v727 = vadd.f32 0.0, %v726
    %v728 = vpop.f32.mrf.mxu0
    %v729 = vpop.f32.mrf.mxu0
    %v730 = vpop.f32.mrf.mxu0
    %731 = vdwg.mxu0
    %v732 = vadd.f32 %v520, %v686
    %v733 = vxor.u32 %v732, 2147483648
    %v734 = vmul.f32 %v733, 1.442695
    %v735 = vpow.pop %v734
    %v736 = vadd.f32 %v735, 1.0
    %v737 = vrcp.pop %v736
    %v738 = vmul.f32 1.0, %v737
    %v739 = vadd.f32 %v521, %v688
    %v740 = vxor.u32 %v739, 2147483648
    %v741 = vmul.f32 %v740, 1.442695
    %v742 = vpow.pop %v741
    %v743 = vadd.f32 %v742, 1.0
    %v744 = vrcp.pop %v743
    %v745 = vmul.f32 1.0, %v744
    %v747 = vlaneseq
    %v748 = vshrl.u32 %v747, 7
    %v749 = vsub.s32 0, %v748
    %v750 = vrot.slane %v519, %v749
    %v752 = vadd.f32 %v727, %v750
    %v753 = vmul.f32 %v738, %v752
    %v754 = vadd.f32 %v522, %v753
    %v755 = vtanh.pop %v754
    %v756 = vsub.f32 1.0, %v745
    %v757 = vmul.f32 %v756, %v755
    %v758 = vmul.f32 %v745, 0.0
    %v759 = vadd.f32 %v757, %v758
    %761 = vset.pattern.permute.xlu0 0
    %762 = vperm.xlu0 %761, %v115
    %v763 = vpop.permute.xlu0 %762
    %v765 = vmul.f32 %v763, %v759
    %v766 = vadd.f32 %v765, 0.0
    %vm767 = vcmp.gt.s32.totalorder %v92, 0
    %v768 = vsel %vm767, 1, 0
    %769 = vset.pattern.permute.xlu0 0
    %770 = vperm.xlu0 %769, %v768
    %v771 = vpop.permute.xlu0 %770
    %vm772 = vcmp.eq.s32.totalorder %v771, 1
    %v773 = vsel %vm772, %v759, 0.0
    %v774 = vld [vmem:[#allocation2 + $0x18] sm:$0xff]
    %v775 = vld [vmem:[#allocation2 + $0x20] sm:$0xff]
    %v776 = vld [vmem:[#allocation2 + $0x28] sm:$0xff]
    %v777 = vpack.c.bf16 %v773, %v773
    %778 = vmatprep.subr.bf16.mxu0 %v625
    %779 = vmatpush1.bf16.msra.mxu0 %v624
    %780 = vmatprep.subr.bf16.mxu0 %v622
    %781 = vmatpush1.bf16.msra.mxu0 %v621
    %782 = vmatprep.subr.bf16.mxu0 %v619
    %783 = vmatpush1.bf16.msra.mxu0 %v618
    %784 = vmatprep.subr.bf16.mxu0 %v616
    %785 = vmatpush1.bf16.msra.mxu0 %v615
    %786 = vmatprep.subr.bf16.mxu0 %v613
    %787 = vmatpush1.bf16.msra.mxu0 %v612
    %788 = vmatprep.subr.bf16.mxu0 %v610
    %789 = vmatpush1.bf16.msra.mxu0 %v609
    %790 = vmatprep.subr.bf16.mxu0 %v607
    %791 = vmatpush1.bf16.msra.mxu0 %v606
    %792 = vmatprep.subr.bf16.mxu0 %v604
    %793 = vmatpush1.bf16.msra.mxu0 %v603
    %794 = vmatprep.subr.bf16.mxu0 0
    %795 = vmatpush2.bf16.msra.mxu0 0
    %796 = vmatprep.subr.bf16.mxu0 0
    %797 = vmatpush2.bf16.msra.mxu0 0
    %798 = vmatprep.subr.bf16.mxu0 0
    %799 = vmatpush2.bf16.msra.mxu0 0
    %800 = vmatprep.subr.bf16.mxu0 0
    %801 = vmatpush2.bf16.msra.mxu0 0
    %802 = vmatprep.subr.bf16.mxu0 0
    %803 = vmatpush2.bf16.msra.mxu0 0
    %804 = vmatprep.subr.bf16.mxu0 0
    %805 = vmatpush2.bf16.msra.mxu0 0
    %806 = vmatprep.subr.bf16.mxu0 0
    %807 = vmatpush2.bf16.msra.mxu0 0
    %808 = vmatprep.subr.bf16.mxu0 0
    %809 = vmatpush2.bf16.msra.mxu0 0
    %810 = vmatprep.mubr.bf16.mxu0 0
    %811 = vmatmul.mubr.bf16.gmra.mxu0 %v777
    %v812 = vpop.f32.mrf.mxu0
    %v813 = vadd.f32 0.0, %v812
    %v814 = vpop.f32.mrf.mxu0
    %v815 = vadd.f32 0.0, %v814
    %v816 = vpop.f32.mrf.mxu0
    %v817 = vpop.f32.mrf.mxu0
    %818 = vdwg.mxu0
    %819 = vmatprep.subr.bf16.mxu0 0
    %820 = vmatpush1.bf16.msra.mxu0 %v626
    %821 = vmatprep.subr.bf16.mxu0 0
    %822 = vmatpush1.bf16.msra.mxu0 %v623
    %823 = vmatprep.subr.bf16.mxu0 0
    %824 = vmatpush1.bf16.msra.mxu0 %v620
    %825 = vmatprep.subr.bf16.mxu0 0
    %826 = vmatpush1.bf16.msra.mxu0 %v617
    %827 = vmatprep.subr.bf16.mxu0 0
    %828 = vmatpush1.bf16.msra.mxu0 %v614
    %829 = vmatprep.subr.bf16.mxu0 0
    %830 = vmatpush1.bf16.msra.mxu0 %v611
    %831 = vmatprep.subr.bf16.mxu0 0
    %832 = vmatpush1.bf16.msra.mxu0 %v608
    %833 = vmatprep.subr.bf16.mxu0 0
    %834 = vmatpush1.bf16.msra.mxu0 %v605
    %835 = vmatprep.subr.bf16.mxu0 0
    %836 = vmatpush2.bf16.msra.mxu0 0
    %837 = vmatprep.subr.bf16.mxu0 0
    %838 = vmatpush2.bf16.msra.mxu0 0
    %839 = vmatprep.subr.bf16.mxu0 0
    %840 = vmatpush2.bf16.msra.mxu0 0
    %841 = vmatprep.subr.bf16.mxu0 0
    %842 = vmatpush2.bf16.msra.mxu0 0
    %843 = vmatprep.subr.bf16.mxu0 0
    %844 = vmatpush2.bf16.msra.mxu0 0
    %845 = vmatprep.subr.bf16.mxu0 0
    %846 = vmatpush2.bf16.msra.mxu0 0
    %847 = vmatprep.subr.bf16.mxu0 0
    %848 = vmatpush2.bf16.msra.mxu0 0
    %849 = vmatprep.subr.bf16.mxu0 0
    %850 = vmatpush2.bf16.msra.mxu0 0
    %851 = vmatprep.mubr.bf16.mxu0 0
    %852 = vmatmul.mubr.bf16.gmra.mxu0 %v777
    %v853 = vpop.f32.mrf.mxu0
    %v854 = vadd.f32 0.0, %v853
    %v855 = vpop.f32.mrf.mxu0
    %v856 = vpop.f32.mrf.mxu0
    %v857 = vpop.f32.mrf.mxu0
    %858 = vdwg.mxu0
    %v859 = vadd.f32 %v774, %v813
    %v860 = vxor.u32 %v859, 2147483648
    %v861 = vmul.f32 %v860, 1.442695
    %v862 = vpow.pop %v861
    %v863 = vadd.f32 %v862, 1.0
    %v864 = vrcp.pop %v863
    %v865 = vmul.f32 1.0, %v864
    %v866 = vadd.f32 %v775, %v815
    %v867 = vxor.u32 %v866, 2147483648
    %v868 = vmul.f32 %v867, 1.442695
    %v869 = vpow.pop %v868
    %v870 = vadd.f32 %v869, 1.0
    %v871 = vrcp.pop %v870
    %v872 = vmul.f32 1.0, %v871
    %v873 = vadd.f32 %v854, %v750
    %v874 = vmul.f32 %v865, %v873
    %v875 = vadd.f32 %v776, %v874
    %v876 = vtanh.pop %v875
    %v877 = vsub.f32 1.0, %v872
    %v878 = vmul.f32 %v877, %v876
    %v879 = vmul.f32 %v872, %v773
    %v880 = vadd.f32 %v878, %v879
    %881 = vset.pattern.permute.xlu0 1
    %882 = vperm.xlu0 %881, %v115
    %v883 = vpop.permute.xlu0 %882
    %v885 = vmul.f32 %v883, %v880
    %v886 = vadd.f32 %v766, %v885
    %vm887 = vcmp.gt.s32.totalorder %v92, 1
    %v888 = vsel %vm887, 1, 0
    %889 = vset.pattern.permute.xlu0 0
    %890 = vperm.xlu0 %889, %v888
    %v891 = vpop.permute.xlu0 %890
    %vm892 = vcmp.eq.s32.totalorder %v891, 1
    %v893 = vsel %vm892, %v880, %v773
    %v894 = vld [vmem:[#allocation2 + $0x30] sm:$0xff]
    %v895 = vld [vmem:[#allocation2 + $0x38] sm:$0xff]
    %v896 = vld [vmem:[#allocation2 + $0x40] sm:$0xff]
    %v897 = vpack.c.bf16 %v893, %v893
    %898 = vmatprep.subr.bf16.mxu0 %v625
    %899 = vmatpush1.bf16.msra.mxu0 %v624
    %900 = vmatprep.subr.bf16.mxu0 %v622
    %901 = vmatpush1.bf16.msra.mxu0 %v621
    %902 = vmatprep.subr.bf16.mxu0 %v619
    %903 = vmatpush1.bf16.msra.mxu0 %v618
    %904 = vmatprep.subr.bf16.mxu0 %v616
    %905 = vmatpush1.bf16.msra.mxu0 %v615
    %906 = vmatprep.subr.bf16.mxu0 %v613
    %907 = vmatpush1.bf16.msra.mxu0 %v612
    %908 = vmatprep.subr.bf16.mxu0 %v610
    %909 = vmatpush1.bf16.msra.mxu0 %v609
    %910 = vmatprep.subr.bf16.mxu0 %v607
    %911 = vmatpush1.bf16.msra.mxu0 %v606
    %912 = vmatprep.subr.bf16.mxu0 %v604
    %913 = vmatpush1.bf16.msra.mxu0 %v603
    %914 = vmatprep.subr.bf16.mxu0 0
    %915 = vmatpush2.bf16.msra.mxu0 0
    %916 = vmatprep.subr.bf16.mxu0 0
    %917 = vmatpush2.bf16.msra.mxu0 0
    %918 = vmatprep.subr.bf16.mxu0 0
    %919 = vmatpush2.bf16.msra.mxu0 0
    %920 = vmatprep.subr.bf16.mxu0 0
    %921 = vmatpush2.bf16.msra.mxu0 0
    %922 = vmatprep.subr.bf16.mxu0 0
    %923 = vmatpush2.bf16.msra.mxu0 0
    %924 = vmatprep.subr.bf16.mxu0 0
    %925 = vmatpush2.bf16.msra.mxu0 0
    %926 = vmatprep.subr.bf16.mxu0 0
    %927 = vmatpush2.bf16.msra.mxu0 0
    %928 = vmatprep.subr.bf16.mxu0 0
    %929 = vmatpush2.bf16.msra.mxu0 0
    %930 = vmatprep.mubr.bf16.mxu0 0
    %931 = vmatmul.mubr.bf16.gmra.mxu0 %v897
    %v932 = vpop.f32.mrf.mxu0
    %v933 = vadd.f32 0.0, %v932
    %v934 = vpop.f32.mrf.mxu0
    %v935 = vadd.f32 0.0, %v934
    %v936 = vpop.f32.mrf.mxu0
    %v937 = vpop.f32.mrf.mxu0
    %938 = vdwg.mxu0
    %939 = vmatprep.subr.bf16.mxu0 0
    %940 = vmatpush1.bf16.msra.mxu0 %v626
    %941 = vmatprep.subr.bf16.mxu0 0
    %942 = vmatpush1.bf16.msra.mxu0 %v623
    %943 = vmatprep.subr.bf16.mxu0 0
    %944 = vmatpush1.bf16.msra.mxu0 %v620
    %945 = vmatprep.subr.bf16.mxu0 0
    %946 = vmatpush1.bf16.msra.mxu0 %v617
    %947 = vmatprep.subr.bf16.mxu0 0
    %948 = vmatpush1.bf16.msra.mxu0 %v614
    %949 = vmatprep.subr.bf16.mxu0 0
    %950 = vmatpush1.bf16.msra.mxu0 %v611
    %951 = vmatprep.subr.bf16.mxu0 0
    %952 = vmatpush1.bf16.msra.mxu0 %v608
    %953 = vmatprep.subr.bf16.mxu0 0
    %954 = vmatpush1.bf16.msra.mxu0 %v605
    %955 = vmatprep.subr.bf16.mxu0 0
    %956 = vmatpush2.bf16.msra.mxu0 0
    %957 = vmatprep.subr.bf16.mxu0 0
    %958 = vmatpush2.bf16.msra.mxu0 0
    %959 = vmatprep.subr.bf16.mxu0 0
    %960 = vmatpush2.bf16.msra.mxu0 0
    %961 = vmatprep.subr.bf16.mxu0 0
    %962 = vmatpush2.bf16.msra.mxu0 0
    %963 = vmatprep.subr.bf16.mxu0 0
    %964 = vmatpush2.bf16.msra.mxu0 0
    %965 = vmatprep.subr.bf16.mxu0 0
    %966 = vmatpush2.bf16.msra.mxu0 0
    %967 = vmatprep.subr.bf16.mxu0 0
    %968 = vmatpush2.bf16.msra.mxu0 0
    %969 = vmatprep.subr.bf16.mxu0 0
    %970 = vmatpush2.bf16.msra.mxu0 0
    %971 = vmatprep.mubr.bf16.mxu0 0
    %972 = vmatmul.mubr.bf16.gmra.mxu0 %v897
    %v973 = vpop.f32.mrf.mxu0
    %v974 = vadd.f32 0.0, %v973
    %v975 = vpop.f32.mrf.mxu0
    %v976 = vpop.f32.mrf.mxu0
    %v977 = vpop.f32.mrf.mxu0
    %978 = vdwg.mxu0
    %v979 = vadd.f32 %v894, %v933
    %v980 = vxor.u32 %v979, 2147483648
    %v981 = vmul.f32 %v980, 1.442695
    %v982 = vpow.pop %v981
    %v983 = vadd.f32 %v982, 1.0
    %v984 = vrcp.pop %v983
    %v985 = vmul.f32 1.0, %v984
    %v986 = vadd.f32 %v895, %v935
    %v987 = vxor.u32 %v986, 2147483648
    %v988 = vmul.f32 %v987, 1.442695
    %v989 = vpow.pop %v988
    %v990 = vadd.f32 %v989, 1.0
    %v991 = vrcp.pop %v990
    %v992 = vmul.f32 1.0, %v991
    %v993 = vadd.f32 %v974, %v750
    %v994 = vmul.f32 %v985, %v993
    %v995 = vadd.f32 %v896, %v994
    %v996 = vtanh.pop %v995
    %v997 = vsub.f32 1.0, %v992
    %v998 = vmul.f32 %v997, %v996
    %v999 = vmul.f32 %v992, %v893
    %v1000 = vadd.f32 %v998, %v999
    %1001 = vset.pattern.permute.xlu0 2
    %1002 = vperm.xlu0 %1001, %v115
    %v1003 = vpop.permute.xlu0 %1002
    %v1005 = vmul.f32 %v1003, %v1000
    %v1006 = vadd.f32 %v886, %v1005
    %vm1007 = vcmp.gt.s32.totalorder %v92, 2
    %v1008 = vsel %vm1007, 1, 0
    %1009 = vset.pattern.permute.xlu0 0
    %1010 = vperm.xlu0 %1009, %v1008
    %v1011 = vpop.permute.xlu0 %1010
    %vm1012 = vcmp.eq.s32.totalorder %v1011, 1
    %v1013 = vsel %vm1012, %v1000, %v893
    %v1014 = vld [vmem:[#allocation2 + $0x48] sm:$0xff]
    %v1015 = vld [vmem:[#allocation2 + $0x50] sm:$0xff]
    %v1016 = vld [vmem:[#allocation2 + $0x58] sm:$0xff]
    %v1017 = vpack.c.bf16 %v1013, %v1013
    %1018 = vmatprep.subr.bf16.mxu0 %v625
    %1019 = vmatpush1.bf16.msra.mxu0 %v624
    %1020 = vmatprep.subr.bf16.mxu0 %v622
    %1021 = vmatpush1.bf16.msra.mxu0 %v621
    %1022 = vmatprep.subr.bf16.mxu0 %v619
    %1023 = vmatpush1.bf16.msra.mxu0 %v618
    %1024 = vmatprep.subr.bf16.mxu0 %v616
    %1025 = vmatpush1.bf16.msra.mxu0 %v615
    %1026 = vmatprep.subr.bf16.mxu0 %v613
    %1027 = vmatpush1.bf16.msra.mxu0 %v612
    %1028 = vmatprep.subr.bf16.mxu0 %v610
    %1029 = vmatpush1.bf16.msra.mxu0 %v609
    %1030 = vmatprep.subr.bf16.mxu0 %v607
    %1031 = vmatpush1.bf16.msra.mxu0 %v606
    %1032 = vmatprep.subr.bf16.mxu0 %v604
    %1033 = vmatpush1.bf16.msra.mxu0 %v603
    %1034 = vmatprep.subr.bf16.mxu0 0
    %1035 = vmatpush2.bf16.msra.mxu0 0
    %1036 = vmatprep.subr.bf16.mxu0 0
    %1037 = vmatpush2.bf16.msra.mxu0 0
    %1038 = vmatprep.subr.bf16.mxu0 0
    %1039 = vmatpush2.bf16.msra.mxu0 0
    %1040 = vmatprep.subr.bf16.mxu0 0
    %1041 = vmatpush2.bf16.msra.mxu0 0
    %1042 = vmatprep.subr.bf16.mxu0 0
    %1043 = vmatpush2.bf16.msra.mxu0 0
    %1044 = vmatprep.subr.bf16.mxu0 0
    %1045 = vmatpush2.bf16.msra.mxu0 0
    %1046 = vmatprep.subr.bf16.mxu0 0
    %1047 = vmatpush2.bf16.msra.mxu0 0
    %1048 = vmatprep.subr.bf16.mxu0 0
    %1049 = vmatpush2.bf16.msra.mxu0 0
    %1050 = vmatprep.mubr.bf16.mxu0 0
    %1051 = vmatmul.mubr.bf16.gmra.mxu0 %v1017
    %v1052 = vpop.f32.mrf.mxu0
    %v1053 = vadd.f32 0.0, %v1052
    %v1054 = vpop.f32.mrf.mxu0
    %v1055 = vadd.f32 0.0, %v1054
    %v1056 = vpop.f32.mrf.mxu0
    %v1057 = vpop.f32.mrf.mxu0
    %1058 = vdwg.mxu0
    %1059 = vmatprep.subr.bf16.mxu0 0
    %1060 = vmatpush1.bf16.msra.mxu0 %v626
    %1061 = vmatprep.subr.bf16.mxu0 0
    %1062 = vmatpush1.bf16.msra.mxu0 %v623
    %1063 = vmatprep.subr.bf16.mxu0 0
    %1064 = vmatpush1.bf16.msra.mxu0 %v620
    %1065 = vmatprep.subr.bf16.mxu0 0
    %1066 = vmatpush1.bf16.msra.mxu0 %v617
    %1067 = vmatprep.subr.bf16.mxu0 0
    %1068 = vmatpush1.bf16.msra.mxu0 %v614
    %1069 = vmatprep.subr.bf16.mxu0 0
    %1070 = vmatpush1.bf16.msra.mxu0 %v611
    %1071 = vmatprep.subr.bf16.mxu0 0
    %1072 = vmatpush1.bf16.msra.mxu0 %v608
    %1073 = vmatprep.subr.bf16.mxu0 0
    %1074 = vmatpush1.bf16.msra.mxu0 %v605
    %1075 = vmatprep.subr.bf16.mxu0 0
    %1076 = vmatpush2.bf16.msra.mxu0 0
    %1077 = vmatprep.subr.bf16.mxu0 0
    %1078 = vmatpush2.bf16.msra.mxu0 0
    %1079 = vmatprep.subr.bf16.mxu0 0
    %1080 = vmatpush2.bf16.msra.mxu0 0
    %1081 = vmatprep.subr.bf16.mxu0 0
    %1082 = vmatpush2.bf16.msra.mxu0 0
    %1083 = vmatprep.subr.bf16.mxu0 0
    %1084 = vmatpush2.bf16.msra.mxu0 0
    %1085 = vmatprep.subr.bf16.mxu0 0
    %1086 = vmatpush2.bf16.msra.mxu0 0
    %1087 = vmatprep.subr.bf16.mxu0 0
    %1088 = vmatpush2.bf16.msra.mxu0 0
    %1089 = vmatprep.subr.bf16.mxu0 0
    %1090 = vmatpush2.bf16.msra.mxu0 0
    %1091 = vmatprep.mubr.bf16.mxu0 0
    %1092 = vmatmul.mubr.bf16.gmra.mxu0 %v1017
    %v1093 = vpop.f32.mrf.mxu0
    %v1094 = vadd.f32 0.0, %v1093
    %v1095 = vpop.f32.mrf.mxu0
    %v1096 = vpop.f32.mrf.mxu0
    %v1097 = vpop.f32.mrf.mxu0
    %1098 = vdwg.mxu0
    %v1099 = vadd.f32 %v1014, %v1053
    %v1100 = vxor.u32 %v1099, 2147483648
    %v1101 = vmul.f32 %v1100, 1.442695
    %v1102 = vpow.pop %v1101
    %v1103 = vadd.f32 %v1102, 1.0
    %v1104 = vrcp.pop %v1103
    %v1105 = vmul.f32 1.0, %v1104
    %v1106 = vadd.f32 %v1015, %v1055
    %v1107 = vxor.u32 %v1106, 2147483648
    %v1108 = vmul.f32 %v1107, 1.442695
    %v1109 = vpow.pop %v1108
    %v1110 = vadd.f32 %v1109, 1.0
    %v1111 = vrcp.pop %v1110
    %v1112 = vmul.f32 1.0, %v1111
    %v1113 = vadd.f32 %v1094, %v750
    %v1114 = vmul.f32 %v1105, %v1113
    %v1115 = vadd.f32 %v1016, %v1114
    %v1116 = vtanh.pop %v1115
    %v1117 = vsub.f32 1.0, %v1112
    %v1118 = vmul.f32 %v1117, %v1116
    %v1119 = vmul.f32 %v1112, %v1013
    %v1120 = vadd.f32 %v1118, %v1119
    %1121 = vset.pattern.permute.xlu0 3
    %1122 = vperm.xlu0 %1121, %v115
    %v1123 = vpop.permute.xlu0 %1122
    %v1125 = vmul.f32 %v1123, %v1120
    %v1126 = vadd.f32 %v1006, %v1125
    %vm1127 = vcmp.gt.s32.totalorder %v92, 3
    %v1128 = vsel %vm1127, 1, 0
    %1129 = vset.pattern.permute.xlu0 0
    %1130 = vperm.xlu0 %1129, %v1128
    %v1131 = vpop.permute.xlu0 %1130
    %vm1132 = vcmp.eq.s32.totalorder %v1131, 1
    %v1133 = vsel %vm1132, %v1120, %v1013
    %v1134 = vld [vmem:[#allocation2 + $0x60] sm:$0xff]
    %v1135 = vld [vmem:[#allocation2 + $0x68] sm:$0xff]
    %v1136 = vld [vmem:[#allocation2 + $0x70] sm:$0xff]
    %v1137 = vpack.c.bf16 %v1133, %v1133
    %1138 = vmatprep.subr.bf16.mxu0 %v625
    %1139 = vmatpush1.bf16.msra.mxu0 %v624
    %1140 = vmatprep.subr.bf16.mxu0 %v622
    %1141 = vmatpush1.bf16.msra.mxu0 %v621
    %1142 = vmatprep.subr.bf16.mxu0 %v619
    %1143 = vmatpush1.bf16.msra.mxu0 %v618
    %1144 = vmatprep.subr.bf16.mxu0 %v616
    %1145 = vmatpush1.bf16.msra.mxu0 %v615
    %1146 = vmatprep.subr.bf16.mxu0 %v613
    %1147 = vmatpush1.bf16.msra.mxu0 %v612
    %1148 = vmatprep.subr.bf16.mxu0 %v610
    %1149 = vmatpush1.bf16.msra.mxu0 %v609
    %1150 = vmatprep.subr.bf16.mxu0 %v607
    %1151 = vmatpush1.bf16.msra.mxu0 %v606
    %1152 = vmatprep.subr.bf16.mxu0 %v604
    %1153 = vmatpush1.bf16.msra.mxu0 %v603
    %1154 = vmatprep.subr.bf16.mxu0 0
    %1155 = vmatpush2.bf16.msra.mxu0 0
    %1156 = vmatprep.subr.bf16.mxu0 0
    %1157 = vmatpush2.bf16.msra.mxu0 0
    %1158 = vmatprep.subr.bf16.mxu0 0
    %1159 = vmatpush2.bf16.msra.mxu0 0
    %1160 = vmatprep.subr.bf16.mxu0 0
    %1161 = vmatpush2.bf16.msra.mxu0 0
    %1162 = vmatprep.subr.bf16.mxu0 0
    %1163 = vmatpush2.bf16.msra.mxu0 0
    %1164 = vmatprep.subr.bf16.mxu0 0
    %1165 = vmatpush2.bf16.msra.mxu0 0
    %1166 = vmatprep.subr.bf16.mxu0 0
    %1167 = vmatpush2.bf16.msra.mxu0 0
    %1168 = vmatprep.subr.bf16.mxu0 0
    %1169 = vmatpush2.bf16.msra.mxu0 0
    %1170 = vmatprep.mubr.bf16.mxu0 0
    %1171 = vmatmul.mubr.bf16.gmra.mxu0 %v1137
    %v1172 = vpop.f32.mrf.mxu0
    %v1173 = vadd.f32 0.0, %v1172
    %v1174 = vpop.f32.mrf.mxu0
    %v1175 = vadd.f32 0.0, %v1174
    %v1176 = vpop.f32.mrf.mxu0
    %v1177 = vpop.f32.mrf.mxu0
    %1178 = vdwg.mxu0
    %1179 = vmatprep.subr.bf16.mxu0 0
    %1180 = vmatpush1.bf16.msra.mxu0 %v626
    %1181 = vmatprep.subr.bf16.mxu0 0
    %1182 = vmatpush1.bf16.msra.mxu0 %v623
    %1183 = vmatprep.subr.bf16.mxu0 0
    %1184 = vmatpush1.bf16.msra.mxu0 %v620
    %1185 = vmatprep.subr.bf16.mxu0 0
    %1186 = vmatpush1.bf16.msra.mxu0 %v617
    %1187 = vmatprep.subr.bf16.mxu0 0
    %1188 = vmatpush1.bf16.msra.mxu0 %v614
    %1189 = vmatprep.subr.bf16.mxu0 0
    %1190 = vmatpush1.bf16.msra.mxu0 %v611
    %1191 = vmatprep.subr.bf16.mxu0 0
    %1192 = vmatpush1.bf16.msra.mxu0 %v608
    %1193 = vmatprep.subr.bf16.mxu0 0
    %1194 = vmatpush1.bf16.msra.mxu0 %v605
    %1195 = vmatprep.subr.bf16.mxu0 0
    %1196 = vmatpush2.bf16.msra.mxu0 0
    %1197 = vmatprep.subr.bf16.mxu0 0
    %1198 = vmatpush2.bf16.msra.mxu0 0
    %1199 = vmatprep.subr.bf16.mxu0 0
    %1200 = vmatpush2.bf16.msra.mxu0 0
    %1201 = vmatprep.subr.bf16.mxu0 0
    %1202 = vmatpush2.bf16.msra.mxu0 0
    %1203 = vmatprep.subr.bf16.mxu0 0
    %1204 = vmatpush2.bf16.msra.mxu0 0
    %1205 = vmatprep.subr.bf16.mxu0 0
    %1206 = vmatpush2.bf16.msra.mxu0 0
    %1207 = vmatprep.subr.bf16.mxu0 0
    %1208 = vmatpush2.bf16.msra.mxu0 0
    %1209 = vmatprep.subr.bf16.mxu0 0
    %1210 = vmatpush2.bf16.msra.mxu0 0
    %1211 = vmatprep.mubr.bf16.mxu0 0
    %1212 = vmatmul.mubr.bf16.gmra.mxu0 %v1137
    %v1213 = vpop.f32.mrf.mxu0
    %v1214 = vadd.f32 0.0, %v1213
    %v1215 = vpop.f32.mrf.mxu0
    %v1216 = vpop.f32.mrf.mxu0
    %v1217 = vpop.f32.mrf.mxu0
    %1218 = vdwg.mxu0
    %v1219 = vadd.f32 %v1134, %v1173
    %v1220 = vxor.u32 %v1219, 2147483648
    %v1221 = vmul.f32 %v1220, 1.442695
    %v1222 = vpow.pop %v1221
    %v1223 = vadd.f32 %v1222, 1.0
    %v1224 = vrcp.pop %v1223
    %v1225 = vmul.f32 1.0, %v1224
    %v1226 = vadd.f32 %v1135, %v1175
    %v1227 = vxor.u32 %v1226, 2147483648
    %v1228 = vmul.f32 %v1227, 1.442695
    %v1229 = vpow.pop %v1228
    %v1230 = vadd.f32 %v1229, 1.0
    %v1231 = vrcp.pop %v1230
    %v1232 = vmul.f32 1.0, %v1231
    %v1233 = vadd.f32 %v1214, %v750
    %v1234 = vmul.f32 %v1225, %v1233
    %v1235 = vadd.f32 %v1136, %v1234
    %v1236 = vtanh.pop %v1235
    %v1237 = vsub.f32 1.0, %v1232
    %v1238 = vmul.f32 %v1237, %v1236
    %v1239 = vmul.f32 %v1232, %v1133
    %v1240 = vadd.f32 %v1238, %v1239
    %1241 = vset.pattern.permute.xlu0 4
    %1242 = vperm.xlu0 %1241, %v115
    %v1243 = vpop.permute.xlu0 %1242
    %v1245 = vmul.f32 %v1243, %v1240
    %v1246 = vadd.f32 %v1126, %v1245
    %vm1247 = vcmp.gt.s32.totalorder %v92, 4
    %v1248 = vsel %vm1247, 1, 0
    %1249 = vset.pattern.permute.xlu0 0
    %1250 = vperm.xlu0 %1249, %v1248
    %v1251 = vpop.permute.xlu0 %1250
    %vm1252 = vcmp.eq.s32.totalorder %v1251, 1
    %v1253 = vsel %vm1252, %v1240, %v1133
    %v1254 = vld [vmem:[#allocation2 + $0x78] sm:$0xff]
    %v1255 = vld [vmem:[#allocation2 + $0x80] sm:$0xff]
    %v1256 = vld [vmem:[#allocation2 + $0x88] sm:$0xff]
    %v1257 = vpack.c.bf16 %v1253, %v1253
    %1258 = vmatprep.subr.bf16.mxu0 %v625
    %1259 = vmatpush1.bf16.msra.mxu0 %v624
    %1260 = vmatprep.subr.bf16.mxu0 %v622
    %1261 = vmatpush1.bf16.msra.mxu0 %v621
    %1262 = vmatprep.subr.bf16.mxu0 %v619
    %1263 = vmatpush1.bf16.msra.mxu0 %v618
    %1264 = vmatprep.subr.bf16.mxu0 %v616
    %1265 = vmatpush1.bf16.msra.mxu0 %v615
    %1266 = vmatprep.subr.bf16.mxu0 %v613
    %1267 = vmatpush1.bf16.msra.mxu0 %v612
    %1268 = vmatprep.subr.bf16.mxu0 %v610
    %1269 = vmatpush1.bf16.msra.mxu0 %v609
    %1270 = vmatprep.subr.bf16.mxu0 %v607
    %1271 = vmatpush1.bf16.msra.mxu0 %v606
    %1272 = vmatprep.subr.bf16.mxu0 %v604
    %1273 = vmatpush1.bf16.msra.mxu0 %v603
    %1274 = vmatprep.subr.bf16.mxu0 0
    %1275 = vmatpush2.bf16.msra.mxu0 0
    %1276 = vmatprep.subr.bf16.mxu0 0
    %1277 = vmatpush2.bf16.msra.mxu0 0
    %1278 = vmatprep.subr.bf16.mxu0 0
    %1279 = vmatpush2.bf16.msra.mxu0 0
    %1280 = vmatprep.subr.bf16.mxu0 0
    %1281 = vmatpush2.bf16.msra.mxu0 0
    %1282 = vmatprep.subr.bf16.mxu0 0
    %1283 = vmatpush2.bf16.msra.mxu0 0
    %1284 = vmatprep.subr.bf16.mxu0 0
    %1285 = vmatpush2.bf16.msra.mxu0 0
    %1286 = vmatprep.subr.bf16.mxu0 0
    %1287 = vmatpush2.bf16.msra.mxu0 0
    %1288 = vmatprep.subr.bf16.mxu0 0
    %1289 = vmatpush2.bf16.msra.mxu0 0
    %1290 = vmatprep.mubr.bf16.mxu0 0
    %1291 = vmatmul.mubr.bf16.gmra.mxu0 %v1257
    %v1292 = vpop.f32.mrf.mxu0
    %v1293 = vadd.f32 0.0, %v1292
    %v1294 = vpop.f32.mrf.mxu0
    %v1295 = vadd.f32 0.0, %v1294
    %v1296 = vpop.f32.mrf.mxu0
    %v1297 = vpop.f32.mrf.mxu0
    %1298 = vdwg.mxu0
    %1299 = vmatprep.subr.bf16.mxu0 0
    %1300 = vmatpush1.bf16.msra.mxu0 %v626
    %1301 = vmatprep.subr.bf16.mxu0 0
    %1302 = vmatpush1.bf16.msra.mxu0 %v623
    %1303 = vmatprep.subr.bf16.mxu0 0
    %1304 = vmatpush1.bf16.msra.mxu0 %v620
    %1305 = vmatprep.subr.bf16.mxu0 0
    %1306 = vmatpush1.bf16.msra.mxu0 %v617
    %1307 = vmatprep.subr.bf16.mxu0 0
    %1308 = vmatpush1.bf16.msra.mxu0 %v614
    %1309 = vmatprep.subr.bf16.mxu0 0
    %1310 = vmatpush1.bf16.msra.mxu0 %v611
    %1311 = vmatprep.subr.bf16.mxu0 0
    %1312 = vmatpush1.bf16.msra.mxu0 %v608
    %1313 = vmatprep.subr.bf16.mxu0 0
    %1314 = vmatpush1.bf16.msra.mxu0 %v605
    %1315 = vmatprep.subr.bf16.mxu0 0
    %1316 = vmatpush2.bf16.msra.mxu0 0
    %1317 = vmatprep.subr.bf16.mxu0 0
    %1318 = vmatpush2.bf16.msra.mxu0 0
    %1319 = vmatprep.subr.bf16.mxu0 0
    %1320 = vmatpush2.bf16.msra.mxu0 0
    %1321 = vmatprep.subr.bf16.mxu0 0
    %1322 = vmatpush2.bf16.msra.mxu0 0
    %1323 = vmatprep.subr.bf16.mxu0 0
    %1324 = vmatpush2.bf16.msra.mxu0 0
    %1325 = vmatprep.subr.bf16.mxu0 0
    %1326 = vmatpush2.bf16.msra.mxu0 0
    %1327 = vmatprep.subr.bf16.mxu0 0
    %1328 = vmatpush2.bf16.msra.mxu0 0
    %1329 = vmatprep.subr.bf16.mxu0 0
    %1330 = vmatpush2.bf16.msra.mxu0 0
    %1331 = vmatprep.mubr.bf16.mxu0 0
    %1332 = vmatmul.mubr.bf16.gmra.mxu0 %v1257
    %v1333 = vpop.f32.mrf.mxu0
    %v1334 = vadd.f32 0.0, %v1333
    %v1335 = vpop.f32.mrf.mxu0
    %v1336 = vpop.f32.mrf.mxu0
    %v1337 = vpop.f32.mrf.mxu0
    %1338 = vdwg.mxu0
    %v1339 = vadd.f32 %v1254, %v1293
    %v1340 = vxor.u32 %v1339, 2147483648
    %v1341 = vmul.f32 %v1340, 1.442695
    %v1342 = vpow.pop %v1341
    %v1343 = vadd.f32 %v1342, 1.0
    %v1344 = vrcp.pop %v1343
    %v1345 = vmul.f32 1.0, %v1344
    %v1346 = vadd.f32 %v1255, %v1295
    %v1347 = vxor.u32 %v1346, 2147483648
    %v1348 = vmul.f32 %v1347, 1.442695
    %v1349 = vpow.pop %v1348
    %v1350 = vadd.f32 %v1349, 1.0
    %v1351 = vrcp.pop %v1350
    %v1352 = vmul.f32 1.0, %v1351
    %v1353 = vadd.f32 %v1334, %v750
    %v1354 = vmul.f32 %v1345, %v1353
    %v1355 = vadd.f32 %v1256, %v1354
    %v1356 = vtanh.pop %v1355
    %v1357 = vsub.f32 1.0, %v1352
    %v1358 = vmul.f32 %v1357, %v1356
    %v1359 = vmul.f32 %v1352, %v1253
    %v1360 = vadd.f32 %v1358, %v1359
    %1361 = vset.pattern.permute.xlu0 5
    %1362 = vperm.xlu0 %1361, %v115
    %v1363 = vpop.permute.xlu0 %1362
    %v1365 = vmul.f32 %v1363, %v1360
    %v1366 = vadd.f32 %v1246, %v1365
    %vm1367 = vcmp.gt.s32.totalorder %v92, 5
    %v1368 = vsel %vm1367, 1, 0
    %1369 = vset.pattern.permute.xlu0 0
    %1370 = vperm.xlu0 %1369, %v1368
    %v1371 = vpop.permute.xlu0 %1370
    %vm1372 = vcmp.eq.s32.totalorder %v1371, 1
    %v1373 = vsel %vm1372, %v1360, %v1253
    %v1374 = vld [vmem:[#allocation2 + $0x90] sm:$0xff]
    %v1375 = vld [vmem:[#allocation2 + $0x98] sm:$0xff]
    %v1376 = vld [vmem:[#allocation2 + $0xa0] sm:$0xff]
    %v1377 = vpack.c.bf16 %v1373, %v1373
    %1378 = vmatprep.subr.bf16.mxu0 %v625
    %1379 = vmatpush1.bf16.msra.mxu0 %v624
    %1380 = vmatprep.subr.bf16.mxu0 %v622
    %1381 = vmatpush1.bf16.msra.mxu0 %v621
    %1382 = vmatprep.subr.bf16.mxu0 %v619
    %1383 = vmatpush1.bf16.msra.mxu0 %v618
    %1384 = vmatprep.subr.bf16.mxu0 %v616
    %1385 = vmatpush1.bf16.msra.mxu0 %v615
    %1386 = vmatprep.subr.bf16.mxu0 %v613
    %1387 = vmatpush1.bf16.msra.mxu0 %v612
    %1388 = vmatprep.subr.bf16.mxu0 %v610
    %1389 = vmatpush1.bf16.msra.mxu0 %v609
    %1390 = vmatprep.subr.bf16.mxu0 %v607
    %1391 = vmatpush1.bf16.msra.mxu0 %v606
    %1392 = vmatprep.subr.bf16.mxu0 %v604
    %1393 = vmatpush1.bf16.msra.mxu0 %v603
    %1394 = vmatprep.subr.bf16.mxu0 0
    %1395 = vmatpush2.bf16.msra.mxu0 0
    %1396 = vmatprep.subr.bf16.mxu0 0
    %1397 = vmatpush2.bf16.msra.mxu0 0
    %1398 = vmatprep.subr.bf16.mxu0 0
    %1399 = vmatpush2.bf16.msra.mxu0 0
    %1400 = vmatprep.subr.bf16.mxu0 0
    %1401 = vmatpush2.bf16.msra.mxu0 0
    %1402 = vmatprep.subr.bf16.mxu0 0
    %1403 = vmatpush2.bf16.msra.mxu0 0
    %1404 = vmatprep.subr.bf16.mxu0 0
    %1405 = vmatpush2.bf16.msra.mxu0 0
    %1406 = vmatprep.subr.bf16.mxu0 0
    %1407 = vmatpush2.bf16.msra.mxu0 0
    %1408 = vmatprep.subr.bf16.mxu0 0
    %1409 = vmatpush2.bf16.msra.mxu0 0
    %1410 = vmatprep.mubr.bf16.mxu0 0
    %1411 = vmatmul.mubr.bf16.gmra.mxu0 %v1377
    %v1412 = vpop.f32.mrf.mxu0
    %v1413 = vadd.f32 0.0, %v1412
    %v1414 = vpop.f32.mrf.mxu0
    %v1415 = vadd.f32 0.0, %v1414
    %v1416 = vpop.f32.mrf.mxu0
    %v1417 = vpop.f32.mrf.mxu0
    %1418 = vdwg.mxu0
    %1419 = vmatprep.subr.bf16.mxu0 0
    %1420 = vmatpush1.bf16.msra.mxu0 %v626
    %1421 = vmatprep.subr.bf16.mxu0 0
    %1422 = vmatpush1.bf16.msra.mxu0 %v623
    %1423 = vmatprep.subr.bf16.mxu0 0
    %1424 = vmatpush1.bf16.msra.mxu0 %v620
    %1425 = vmatprep.subr.bf16.mxu0 0
    %1426 = vmatpush1.bf16.msra.mxu0 %v617
    %1427 = vmatprep.subr.bf16.mxu0 0
    %1428 = vmatpush1.bf16.msra.mxu0 %v614
    %1429 = vmatprep.subr.bf16.mxu0 0
    %1430 = vmatpush1.bf16.msra.mxu0 %v611
    %1431 = vmatprep.subr.bf16.mxu0 0
    %1432 = vmatpush1.bf16.msra.mxu0 %v608
    %1433 = vmatprep.subr.bf16.mxu0 0
    %1434 = vmatpush1.bf16.msra.mxu0 %v605
    %1435 = vmatprep.subr.bf16.mxu0 0
    %1436 = vmatpush2.bf16.msra.mxu0 0
    %1437 = vmatprep.subr.bf16.mxu0 0
    %1438 = vmatpush2.bf16.msra.mxu0 0
    %1439 = vmatprep.subr.bf16.mxu0 0
    %1440 = vmatpush2.bf16.msra.mxu0 0
    %1441 = vmatprep.subr.bf16.mxu0 0
    %1442 = vmatpush2.bf16.msra.mxu0 0
    %1443 = vmatprep.subr.bf16.mxu0 0
    %1444 = vmatpush2.bf16.msra.mxu0 0
    %1445 = vmatprep.subr.bf16.mxu0 0
    %1446 = vmatpush2.bf16.msra.mxu0 0
    %1447 = vmatprep.subr.bf16.mxu0 0
    %1448 = vmatpush2.bf16.msra.mxu0 0
    %1449 = vmatprep.subr.bf16.mxu0 0
    %1450 = vmatpush2.bf16.msra.mxu0 0
    %1451 = vmatprep.mubr.bf16.mxu0 0
    %1452 = vmatmul.mubr.bf16.gmra.mxu0 %v1377
    %v1453 = vpop.f32.mrf.mxu0
    %v1454 = vadd.f32 0.0, %v1453
    %v1455 = vpop.f32.mrf.mxu0
    %v1456 = vpop.f32.mrf.mxu0
    %v1457 = vpop.f32.mrf.mxu0
    %1458 = vdwg.mxu0
    %v1459 = vadd.f32 %v1374, %v1413
    %v1460 = vxor.u32 %v1459, 2147483648
    %v1461 = vmul.f32 %v1460, 1.442695
    %v1462 = vpow.pop %v1461
    %v1463 = vadd.f32 %v1462, 1.0
    %v1464 = vrcp.pop %v1463
    %v1465 = vmul.f32 1.0, %v1464
    %v1466 = vadd.f32 %v1375, %v1415
    %v1467 = vxor.u32 %v1466, 2147483648
    %v1468 = vmul.f32 %v1467, 1.442695
    %v1469 = vpow.pop %v1468
    %v1470 = vadd.f32 %v1469, 1.0
    %v1471 = vrcp.pop %v1470
    %v1472 = vmul.f32 1.0, %v1471
    %v1473 = vadd.f32 %v1454, %v750
    %v1474 = vmul.f32 %v1465, %v1473
    %v1475 = vadd.f32 %v1376, %v1474
    %v1476 = vtanh.pop %v1475
    %v1477 = vsub.f32 1.0, %v1472
    %v1478 = vmul.f32 %v1477, %v1476
    %v1479 = vmul.f32 %v1472, %v1373
    %v1480 = vadd.f32 %v1478, %v1479
    %1481 = vset.pattern.permute.xlu0 6
    %1482 = vperm.xlu0 %1481, %v115
    %v1483 = vpop.permute.xlu0 %1482
    %v1485 = vmul.f32 %v1483, %v1480
    %v1486 = vadd.f32 %v1366, %v1485
    %vm1487 = vcmp.gt.s32.totalorder %v92, 6
    %v1488 = vsel %vm1487, 1, 0
    %1489 = vset.pattern.permute.xlu0 0
    %1490 = vperm.xlu0 %1489, %v1488
    %v1491 = vpop.permute.xlu0 %1490
    %vm1492 = vcmp.eq.s32.totalorder %v1491, 1
    %v1493 = vsel %vm1492, %v1480, %v1373
    %v1494 = vld [vmem:[#allocation2 + $0xa8] sm:$0xff]
    %v1495 = vld [vmem:[#allocation2 + $0xb0] sm:$0xff]
    %v1496 = vld [vmem:[#allocation2 + $0xb8] sm:$0xff]
    %v1497 = vpack.c.bf16 %v1493, %v1493
    %1498 = vmatprep.subr.bf16.mxu0 %v625
    %1499 = vmatpush1.bf16.msra.mxu0 %v624
    %1500 = vmatprep.subr.bf16.mxu0 %v622
    %1501 = vmatpush1.bf16.msra.mxu0 %v621
    %1502 = vmatprep.subr.bf16.mxu0 %v619
    %1503 = vmatpush1.bf16.msra.mxu0 %v618
    %1504 = vmatprep.subr.bf16.mxu0 %v616
    %1505 = vmatpush1.bf16.msra.mxu0 %v615
    %1506 = vmatprep.subr.bf16.mxu0 %v613
    %1507 = vmatpush1.bf16.msra.mxu0 %v612
    %1508 = vmatprep.subr.bf16.mxu0 %v610
    %1509 = vmatpush1.bf16.msra.mxu0 %v609
    %1510 = vmatprep.subr.bf16.mxu0 %v607
    %1511 = vmatpush1.bf16.msra.mxu0 %v606
    %1512 = vmatprep.subr.bf16.mxu0 %v604
    %1513 = vmatpush1.bf16.msra.mxu0 %v603
    %1514 = vmatprep.subr.bf16.mxu0 0
    %1515 = vmatpush2.bf16.msra.mxu0 0
    %1516 = vmatprep.subr.bf16.mxu0 0
    %1517 = vmatpush2.bf16.msra.mxu0 0
    %1518 = vmatprep.subr.bf16.mxu0 0
    %1519 = vmatpush2.bf16.msra.mxu0 0
    %1520 = vmatprep.subr.bf16.mxu0 0
    %1521 = vmatpush2.bf16.msra.mxu0 0
    %1522 = vmatprep.subr.bf16.mxu0 0
    %1523 = vmatpush2.bf16.msra.mxu0 0
    %1524 = vmatprep.subr.bf16.mxu0 0
    %1525 = vmatpush2.bf16.msra.mxu0 0
    %1526 = vmatprep.subr.bf16.mxu0 0
    %1527 = vmatpush2.bf16.msra.mxu0 0
    %1528 = vmatprep.subr.bf16.mxu0 0
    %1529 = vmatpush2.bf16.msra.mxu0 0
    %1530 = vmatprep.mubr.bf16.mxu0 0
    %1531 = vmatmul.mubr.bf16.gmra.mxu0 %v1497
    %v1532 = vpop.f32.mrf.mxu0
    %v1533 = vadd.f32 0.0, %v1532
    %v1534 = vpop.f32.mrf.mxu0
    %v1535 = vadd.f32 0.0, %v1534
    %v1536 = vpop.f32.mrf.mxu0
    %v1537 = vpop.f32.mrf.mxu0
    %1538 = vdwg.mxu0
    %1539 = vmatprep.subr.bf16.mxu0 0
    %1540 = vmatpush1.bf16.msra.mxu0 %v626
    %1541 = vmatprep.subr.bf16.mxu0 0
    %1542 = vmatpush1.bf16.msra.mxu0 %v623
    %1543 = vmatprep.subr.bf16.mxu0 0
    %1544 = vmatpush1.bf16.msra.mxu0 %v620
    %1545 = vmatprep.subr.bf16.mxu0 0
    %1546 = vmatpush1.bf16.msra.mxu0 %v617
    %1547 = vmatprep.subr.bf16.mxu0 0
    %1548 = vmatpush1.bf16.msra.mxu0 %v614
    %1549 = vmatprep.subr.bf16.mxu0 0
    %1550 = vmatpush1.bf16.msra.mxu0 %v611
    %1551 = vmatprep.subr.bf16.mxu0 0
    %1552 = vmatpush1.bf16.msra.mxu0 %v608
    %1553 = vmatprep.subr.bf16.mxu0 0
    %1554 = vmatpush1.bf16.msra.mxu0 %v605
    %1555 = vmatprep.subr.bf16.mxu0 0
    %1556 = vmatpush2.bf16.msra.mxu0 0
    %1557 = vmatprep.subr.bf16.mxu0 0
    %1558 = vmatpush2.bf16.msra.mxu0 0
    %1559 = vmatprep.subr.bf16.mxu0 0
    %1560 = vmatpush2.bf16.msra.mxu0 0
    %1561 = vmatprep.subr.bf16.mxu0 0
    %1562 = vmatpush2.bf16.msra.mxu0 0
    %1563 = vmatprep.subr.bf16.mxu0 0
    %1564 = vmatpush2.bf16.msra.mxu0 0
    %1565 = vmatprep.subr.bf16.mxu0 0
    %1566 = vmatpush2.bf16.msra.mxu0 0
    %1567 = vmatprep.subr.bf16.mxu0 0
    %1568 = vmatpush2.bf16.msra.mxu0 0
    %1569 = vmatprep.subr.bf16.mxu0 0
    %1570 = vmatpush2.bf16.msra.mxu0 0
    %1571 = vmatprep.mubr.bf16.mxu0 0
    %1572 = vmatmul.mubr.bf16.gmra.mxu0 %v1497
    %v1573 = vpop.f32.mrf.mxu0
    %v1574 = vadd.f32 0.0, %v1573
    %v1575 = vpop.f32.mrf.mxu0
    %v1576 = vpop.f32.mrf.mxu0
    %v1577 = vpop.f32.mrf.mxu0
    %1578 = vdwg.mxu0
    %v1579 = vadd.f32 %v1494, %v1533
    %v1580 = vxor.u32 %v1579, 2147483648
    %v1581 = vmul.f32 %v1580, 1.442695
    %v1582 = vpow.pop %v1581
    %v1583 = vadd.f32 %v1582, 1.0
    %v1584 = vrcp.pop %v1583
    %v1585 = vmul.f32 1.0, %v1584
    %v1586 = vadd.f32 %v1495, %v1535
    %v1587 = vxor.u32 %v1586, 2147483648
    %v1588 = vmul.f32 %v1587, 1.442695
    %v1589 = vpow.pop %v1588
    %v1590 = vadd.f32 %v1589, 1.0
    %v1591 = vrcp.pop %v1590
    %v1592 = vmul.f32 1.0, %v1591
    %v1593 = vadd.f32 %v1574, %v750
    %v1594 = vmul.f32 %v1585, %v1593
    %v1595 = vadd.f32 %v1496, %v1594
    %v1596 = vtanh.pop %v1595
    %v1597 = vsub.f32 1.0, %v1592
    %v1598 = vmul.f32 %v1597, %v1596
    %v1599 = vmul.f32 %v1592, %v1493
    %v1600 = vadd.f32 %v1598, %v1599
    %1601 = vset.pattern.permute.xlu0 7
    %1602 = vperm.xlu0 %1601, %v115
    %v1603 = vpop.permute.xlu0 %1602
    %v1605 = vmul.f32 %v1603, %v1600
    %v1606 = vadd.f32 %v1486, %v1605
    %vm1607 = vcmp.gt.s32.totalorder %v92, 7
    %v1608 = vsel %vm1607, 1, 0
    %1609 = vset.pattern.permute.xlu0 0
    %1610 = vperm.xlu0 %1609, %v1608
    %v1611 = vpop.permute.xlu0 %1610
    %vm1612 = vcmp.eq.s32.totalorder %v1611, 1
    %v1613 = vsel %vm1612, %v1600, %v1493
    %v1614 = vpack.c.bf16 %v1613, %v1613
    %v1615 = vpack.c.bf16 %v1606, %v1606
    %v1616 = vld [vmem:[#allocation9] sm:$0xf]
    %v1617 = vld [vmem:[#allocation9 + $0x4] sm:$0xf]
    %v1618 = vld [vmem:[#allocation9 + $0x8] sm:$0xf]
    %v1619 = vld [vmem:[#allocation9 + $0xc] sm:$0xf]
    %v1620 = vld [vmem:[#allocation9 + $0x10] sm:$0xf]
    %v1621 = vld [vmem:[#allocation9 + $0x14] sm:$0xf]
    %v1622 = vld [vmem:[#allocation9 + $0x18] sm:$0xf]
    %v1623 = vld [vmem:[#allocation9 + $0x1c] sm:$0xf]
    %v1624 = vld [vmem:[#allocation9 + $0x20] sm:$0xf]
    %v1625 = vld [vmem:[#allocation9 + $0x24] sm:$0xf]
    %v1626 = vld [vmem:[#allocation9 + $0x28] sm:$0xf]
    %v1627 = vld [vmem:[#allocation9 + $0x2c] sm:$0xf]
    %v1628 = vld [vmem:[#allocation9 + $0x30] sm:$0xf]
    %v1629 = vld [vmem:[#allocation9 + $0x34] sm:$0xf]
    %v1630 = vld [vmem:[#allocation9 + $0x38] sm:$0xf]
    %v1631 = vld [vmem:[#allocation9 + $0x3c] sm:$0xf]
    %v1632 = vld [vmem:[#allocation9 + $0x40] sm:$0xf]
    %v1633 = vld [vmem:[#allocation9 + $0x44] sm:$0xf]
    %v1634 = vld [vmem:[#allocation9 + $0x48] sm:$0xf]
    %v1635 = vld [vmem:[#allocation9 + $0x4c] sm:$0xf]
    %v1636 = vld [vmem:[#allocation9 + $0x50] sm:$0xf]
    %v1637 = vld [vmem:[#allocation9 + $0x54] sm:$0xf]
    %v1638 = vld [vmem:[#allocation9 + $0x58] sm:$0xf]
    %v1639 = vld [vmem:[#allocation9 + $0x5c] sm:$0xf]
    %v1640 = vld [vmem:[#allocation9 + $0x60] sm:$0xf]
    %v1641 = vld [vmem:[#allocation9 + $0x64] sm:$0xf]
    %v1642 = vld [vmem:[#allocation9 + $0x68] sm:$0xf]
    %v1643 = vld [vmem:[#allocation9 + $0x6c] sm:$0xf]
    %v1644 = vld [vmem:[#allocation9 + $0x70] sm:$0xf]
    %v1645 = vld [vmem:[#allocation9 + $0x74] sm:$0xf]
    %v1646 = vld [vmem:[#allocation9 + $0x78] sm:$0xf]
    %v1647 = vld [vmem:[#allocation9 + $0x7c] sm:$0xf]
    %v1648 = vld [vmem:[%s8] sm:$0x1]
    %v1650 = vlaneseq
    %v1651 = vshrl.u32 %v1650, 7
    %v1652 = vsub.s32 0, %v1651
    %v1653 = vrot.slane %v1648, %v1652
    %v1687 = vunpack.c.l.b16 %v1616
    %v1688 = vunpack.c.l.b16 %v1617
    %v1689 = vunpack.c.l.b16 %v1618
    %v1690 = vunpack.c.l.b16 %v1619
    %v1691 = vunpack.c.l.b16 %v1620
    %v1692 = vunpack.c.l.b16 %v1621
    %v1693 = vunpack.c.l.b16 %v1622
    %v1694 = vunpack.c.l.b16 %v1623
    %v1695 = vunpack.c.l.b16 %v1624
    %v1696 = vunpack.c.l.b16 %v1625
    %v1697 = vunpack.c.l.b16 %v1626
    %v1698 = vunpack.c.l.b16 %v1627
    %v1699 = vunpack.c.l.b16 %v1628
    %v1700 = vunpack.c.l.b16 %v1629
    %v1701 = vunpack.c.l.b16 %v1630
    %v1702 = vunpack.c.l.b16 %v1631
    %v1703 = vunpack.c.l.b16 %v1632
    %v1704 = vunpack.c.l.b16 %v1633
    %v1705 = vunpack.c.l.b16 %v1634
    %v1706 = vunpack.c.l.b16 %v1635
    %v1707 = vunpack.c.l.b16 %v1636
    %v1708 = vunpack.c.l.b16 %v1637
    %v1709 = vunpack.c.l.b16 %v1638
    %v1710 = vunpack.c.l.b16 %v1639
    %v1711 = vunpack.c.l.b16 %v1640
    %v1712 = vunpack.c.l.b16 %v1641
    %v1713 = vunpack.c.l.b16 %v1642
    %v1714 = vunpack.c.l.b16 %v1643
    %v1715 = vunpack.c.l.b16 %v1644
    %v1716 = vunpack.c.l.b16 %v1645
    %v1717 = vunpack.c.l.b16 %v1646
    %v1718 = vunpack.c.l.b16 %v1647
    %v1719 = vpack.c.b16 %v1688, %v1687
    %v1720 = vpack.c.b16 %v1690, %v1689
    %v1721 = vpack.c.b16 %v1692, %v1691
    %v1722 = vpack.c.b16 %v1694, %v1693
    %v1723 = vpack.c.b16 %v1696, %v1695
    %v1724 = vpack.c.b16 %v1698, %v1697
    %v1725 = vpack.c.b16 %v1700, %v1699
    %v1726 = vpack.c.b16 %v1702, %v1701
    %v1727 = vpack.c.b16 %v1704, %v1703
    %v1728 = vpack.c.b16 %v1706, %v1705
    %v1729 = vpack.c.b16 %v1708, %v1707
    %v1730 = vpack.c.b16 %v1710, %v1709
    %v1731 = vpack.c.b16 %v1712, %v1711
    %v1732 = vpack.c.b16 %v1714, %v1713
    %v1733 = vpack.c.b16 %v1716, %v1715
    %v1734 = vpack.c.b16 %v1718, %v1717
    %1751 = vmatprep.subr.bf16.mxu0 0
    %1752 = vmatpush1.bf16.msra.mxu0 %v1726
    %1753 = vmatprep.subr.bf16.mxu0 0
    %1754 = vmatpush1.bf16.msra.mxu0 %v1725
    %1755 = vmatprep.subr.bf16.mxu0 0
    %1756 = vmatpush1.bf16.msra.mxu0 %v1724
    %1757 = vmatprep.subr.bf16.mxu0 0
    %1758 = vmatpush1.bf16.msra.mxu0 %v1723
    %1759 = vmatprep.subr.bf16.mxu0 0
    %1760 = vmatpush1.bf16.msra.mxu0 %v1722
    %1761 = vmatprep.subr.bf16.mxu0 0
    %1762 = vmatpush1.bf16.msra.mxu0 %v1721
    %1763 = vmatprep.subr.bf16.mxu0 0
    %1764 = vmatpush1.bf16.msra.mxu0 %v1720
    %1765 = vmatprep.subr.bf16.mxu0 0
    %1766 = vmatpush1.bf16.msra.mxu0 %v1719
    %1767 = vmatprep.subr.bf16.mxu0 0
    %1768 = vmatpush2.bf16.msra.mxu0 %v1734
    %1769 = vmatprep.subr.bf16.mxu0 0
    %1770 = vmatpush2.bf16.msra.mxu0 %v1733
    %1771 = vmatprep.subr.bf16.mxu0 0
    %1772 = vmatpush2.bf16.msra.mxu0 %v1732
    %1773 = vmatprep.subr.bf16.mxu0 0
    %1774 = vmatpush2.bf16.msra.mxu0 %v1731
    %1775 = vmatprep.subr.bf16.mxu0 0
    %1776 = vmatpush2.bf16.msra.mxu0 %v1730
    %1777 = vmatprep.subr.bf16.mxu0 0
    %1778 = vmatpush2.bf16.msra.mxu0 %v1729
    %1779 = vmatprep.subr.bf16.mxu0 0
    %1780 = vmatpush2.bf16.msra.mxu0 %v1728
    %1781 = vmatprep.subr.bf16.mxu0 0
    %1782 = vmatpush2.bf16.msra.mxu0 %v1727
    %1783 = vmatprep.mubr.bf16.mxu0 %v1615
    %1784 = vmatmul.mubr.bf16.gmra.mxu0 %v1614
    %v1785 = vpop.f32.mrf.mxu0
    %v1786 = vadd.f32 %v1653, %v1785
    %v1787 = vpop.f32.mrf.mxu0
    %v1788 = vpop.f32.mrf.mxu0
    %v1789 = vpop.f32.mrf.mxu0
    %1790 = vdwg.mxu0
    %1791 = vst [vmem:[#allocation11] sm:$0xff] %v1786
    %1792 = vst [vmem:[#allocation12] sm:$0xff] %v1613
    // Predicated region
    $region54: #{tpu_custom_call.1} parent=1 // pred_check
      _
    $region55: #{tpu_custom_call.1} parent=1 // pred_check_branch
      %1794 = sbr.rel (0) target = $region57
    $region56: #{tpu_custom_call.1} parent=1 // pred_region
      %s1796 = ssub.s32 128, 128
      %1797 = vsyncadd [#allocation5], %s1796
      %s1799 = sshll.u32 [#allocation11], 4
      %s1800 = int_to_ptr.vmem [resolvable:$true] %s1799
      %1802 = dma.vmem_to_hbm [thread:$0]  %s1800, 128, %s9, [#allocation5]
    $region57: #{tpu_custom_call.1} parent=1 // pred_fallthru
      _
    // Predicated region
    $region58: #{tpu_custom_call.1} parent=1 // pred_check
      _
    $region59: #{tpu_custom_call.1} parent=1 // pred_check_branch
      %1804 = sbr.rel (0) target = $region61
    $region60: #{tpu_custom_call.1} parent=1 // pred_region
      %s1806 = ssub.s32 128, 128
      %1807 = vsyncadd [#allocation13], %s1806
      %s1809 = sshll.u32 [#allocation12], 4
      %s1810 = int_to_ptr.vmem [resolvable:$true] %s1809
      %1812 = dma.vmem_to_hbm [thread:$0]  %s1810, 128, %s10, [#allocation13]
    $region61: #{tpu_custom_call.1} parent=1 // pred_fallthru
      _
    // Predicated region
    $region62: #{tpu_custom_call.1} parent=1 // pred_check
      _
    $region63: #{tpu_custom_call.1} parent=1 // pred_check_branch
      %1814 = sbr.rel (0) target = $region65
    $region64: #{tpu_custom_call.1} parent=1 // pred_region
      %1815 = dma.done [#allocation5], 128
    $region65: #{tpu_custom_call.1} parent=1 // pred_fallthru
      _
    // Predicated region
    $region66: #{tpu_custom_call.1} parent=1 // pred_check
      _
    $region67: #{tpu_custom_call.1} parent=1 // pred_check_branch
      %1817 = sbr.rel (0) target = $region69
    $region68: #{tpu_custom_call.1} parent=1 // pred_region
      %1818 = dma.done [#allocation13], 128
    $region69: #{tpu_custom_call.1} parent=1 // pred_fallthru
      _
    %1819 = vsyncpa [#allocation4], 1
    %1820 = vsyncpa [#allocation7], 1
    %1821 = vsyncpa [#allocation10], 1
    %1822 = vsyncpa [#allocation5], 1
    %1823 = vsyncpa [#allocation13], 1

</llo_original>
